<compile_context>
chip_gen: v7x
topology: tpu7x:2x2x1
jax: 0.10.0
libtpu: 0.0.40
codegen_flags: <defaults>
</compile_context>

<pallas_src>
import functools

import jax
import jax.numpy as jnp
from jax import lax
from jax.experimental import pallas as pl
from jax.experimental.pallas import tpu as pltpu


LANE = 128   # lane-dense padded feature width
EPS = 1e-5


def _round_up(v, m):
    return ((v + m - 1) // m) * m


def _pad2d(a, rows, cols, dtype=jnp.float32):
    a = jnp.asarray(a, dtype)
    return jnp.zeros((rows, cols), dtype).at[: a.shape[0], : a.shape[1]].set(a)


# ----------------------------- fused Pallas kernel ----------------------------

def _sage_fused_kernel(a_ref, dinv_ref, x_ref, ws1_ref, wn1_ref, b1_ref, g_ref,
                       bt_ref, ws2_ref, wn2_ref, b2_ref, o_ref, h_scr, p_scr,
                       *, hid_true):
    phase = pl.program_id(0)
    tm = a_ref.shape[0]
    row0 = pl.multiple_of(pl.program_id(1) * tm, tm)

    # binary int8 adjacency tile -> bf16 (exact for {0,1}); scale applied post-matmul
    a = a_ref[...].astype(jnp.bfloat16)          # (tm, Np) bf16
    dinv = dinv_ref[...]                         # (tm, 1)  f32, exact 1/deg

    @pl.when(phase == 0)
    def _layer1():
        # mean aggregation == (binary A row tile) @ x, then per-row 1/deg scale
        h_neigh = jnp.dot(a, x_ref[...], preferred_element_type=jnp.float32) * dinv
        x_row = x_ref[pl.ds(row0, tm), :]        # bf16
        # two bf16 MXU matmuls with f32 accumulation (no f32 concat temp)
        z = (jnp.dot(x_row, ws1_ref[...], preferred_element_type=jnp.float32)
             + jnp.dot(h_neigh.astype(jnp.bfloat16), wn1_ref[...],
                       preferred_element_type=jnp.float32)
             + b1_ref[...])
        z = jnp.maximum(z, 0.0)                  # relu (before norm, as DGL)
        # one-pass LayerNorm over the real hid lanes; padded lanes of z are exactly
        # zero because padded weight/bias/gamma/beta entries are exactly zero.
        s = jnp.sum(z, axis=-1, keepdims=True)
        ss = jnp.sum(z * z, axis=-1, keepdims=True)
        mean = s * (1.0 / hid_true)
        var = jnp.maximum(ss * (1.0 / hid_true) - mean * mean, 0.0)
        h = (z - mean) * lax.rsqrt(var + EPS) * g_ref[...] + bt_ref[...]
        # write bf16 once; phase 1 consumes without any re-cast
        h_scr[pl.ds(row0, tm), :] = h.astype(jnp.bfloat16)
        p_scr[pl.ds(row0, tm), :] = jnp.dot(
            h.astype(jnp.bfloat16), wn2_ref[...],
            preferred_element_type=jnp.float32).astype(jnp.bfloat16)
        # NOTE: o_ref is intentionally NOT written in phase 0 (no dead writeback;
        # the out index_map parks all phase-0 steps on block (0,0), which the
        # phase-1 step r=0 fully overwrites before its single writeback).

    @pl.when(phase == 1)
    def _layer2():
        h_row = h_scr[pl.ds(row0, tm), :]        # bf16, no cast needed
        neigh = jnp.dot(a, p_scr[...], preferred_element_type=jnp.float32) * dinv
        o_ref[...] = (jnp.dot(h_row, ws2_ref[...], preferred_element_type=jnp.float32)
                      + neigh + b2_ref[...])


# ----------------------------- host-side wrapper -------------------------------

def sage_forward(adj, x, params, *, row_tile=256):
    """Full SAGE.forward: conv1 (relu + LayerNorm) -> conv3, in one pallas_call.

    adj: dense binary adjacency (adj[i, j] = 1 iff edge j -> i contributes to i's
    mean aggregation; no self loops).  Mean aggregation uses exact f32 1/deg.
    """
    n, in_feats = x.shape
    hid = params["w_self1"].shape[1]
    out = params["w_self2"].shape[1]

    np_ = _round_up(n, LANE)          # padded node count (rows and contraction dim)
    fp = _round_up(in_feats, LANE)    # padded feature widths (lane-dense)
    hp = _round_up(hid, LANE)
    op = _round_up(out, LANE)

    # row-tile: largest 128-multiple <= row_tile that divides padded N
    tm = min(_round_up(row_tile, LANE), np_)
    while np_ % tm:
        tm -= LANE
    assert tm >= LANE and np_ % tm == 0

    adj = jnp.asarray(adj, jnp.float32)
    deg = jnp.sum(adj, axis=1, keepdims=True)
    inv_deg = 1.0 / jnp.maximum(deg, 1.0)          # isolated nodes -> 0 via zero A row

    # zero-pad + pack.  Padded lanes stay exactly zero through the whole kernel
    # because every padded weight / bias / gamma / beta entry is exactly zero
    # (required by the /hid_true LayerNorm trick).
    a_p = _pad2d(adj, np_, np_, jnp.int8)          # 8-bit binary adjacency
    d_p = _pad2d(inv_deg, np_, 1, jnp.float32)
    x_p = _pad2d(x, np_, fp, jnp.bfloat16)
    ws1 = _pad2d(params["w_self1"], fp, hp, jnp.bfloat16)
    wn1 = _pad2d(params["w_neigh1"], fp, hp, jnp.bfloat16)
    b1 = _pad2d(params["b1"], 1, hp)
    g1 = _pad2d(params["gamma1"], 1, hp)
    bt1 = _pad2d(params["beta1"], 1, hp)
    ws2 = _pad2d(params["w_self2"], hp, op, jnp.bfloat16)
    wn2 = _pad2d(params["w_neigh2"], hp, op, jnp.bfloat16)
    b2 = _pad2d(params["b2"], 1, op)

    # explicit VMEM budget (double-buffered tiles + residents + scratches) + margin
    est = (2 * tm * np_ * 1                      # A row tile (int8), 2 buffers
           + 2 * tm * 4                          # 1/deg tile
           + 2 * np_ * fp * 2                    # resident x (bf16)
           + 2 * 2 * (fp * hp + hp * op) * 2     # ws1,wn1,ws2,wn2 (bf16)
           + 2 * (3 * hp + op) * 4               # biases / gamma / beta (f32)
           + np_ * (hp + op) * 2                 # bf16 h/p scratches
           + 2 * tm * op * 4)                    # output tile (f32), 2 buffers
    try:
        vmem_cap = pltpu.get_tpu_info().vmem_capacity_bytes
    except Exception:
        vmem_cap = 64 * 1024 * 1024              # v7x has the smallest VMEM
    vmem_limit = int(min(max(int(est * 1.5), 32 * 1024 * 1024),
                         vmem_cap - 8 * 1024 * 1024))

    kernel = functools.partial(_sage_fused_kernel, hid_true=float(hid))

    out_pad = pl.pallas_call(
        kernel,
        out_shape=jax.ShapeDtypeStruct((np_, op), jnp.float32),
        grid=(2, np_ // tm),
        in_specs=[
            pl.BlockSpec((tm, np_), lambda ph, r: (r, 0)),      # A row tile (int8)
            pl.BlockSpec((tm, 1), lambda ph, r: (r, 0)),        # 1/deg row tile
            pl.BlockSpec((np_, fp), lambda ph, r: (0, 0)),      # x (resident)
            pl.BlockSpec((fp, hp), lambda ph, r: (0, 0)),       # W_self1
            pl.BlockSpec((fp, hp), lambda ph, r: (0, 0)),       # W_neigh1
            pl.BlockSpec((1, hp), lambda ph, r: (0, 0)),        # b1
            pl.BlockSpec((1, hp), lambda ph, r: (0, 0)),        # gamma1
            pl.BlockSpec((1, hp), lambda ph, r: (0, 0)),        # beta1
            pl.BlockSpec((hp, op), lambda ph, r: (0, 0)),       # W_self2
            pl.BlockSpec((hp, op), lambda ph, r: (0, 0)),       # W_neigh2
            pl.BlockSpec((1, op), lambda ph, r: (0, 0)),        # b2
        ],
        # phase-0 steps all map onto block (0,0) and never store -> the only
        # writeback of block (0,0) happens after phase-1 step r=0 writes it.
        out_specs=pl.BlockSpec((tm, op), lambda ph, r: (ph * r, 0)),
        scratch_shapes=[
            pltpu.VMEM((np_, hp), jnp.bfloat16),   # h  (layer-1 output, all rows)
            pltpu.VMEM((np_, op), jnp.bfloat16),   # p = h @ W_neigh2 (all rows)
        ],
        compiler_params=pltpu.CompilerParams(
            # phase-1 tiles depend on ALL phase-0 tiles via the VMEM scratch, so
            # both axes must stay sequential ("arbitrary").
            dimension_semantics=("arbitrary", "arbitrary"),
            vmem_limit_bytes=vmem_limit),
    )(a_p, d_p, x_p, ws1, wn1, b1, g1, bt1, ws2, wn2, b2)

    return out_pad[:n, :out]


# ----------------------------- parameter / graph setup -------------------------

def init_params(key, in_feats, hid_feats, out_feats):
    ks = jax.random.split(key, 4)

    def glorot(k, fan_in, fan_out):
        limit = (6.0 / (fan_in + fan_out)) ** 0.5
        return jax.random.uniform(k, (fan_in, fan_out), jnp.float32, -limit, limit)

    return {
        "w_self1":  glorot(ks[0], in_feats, hid_feats),
        "w_neigh1": glorot(ks[1], in_feats, hid_feats),
        "b1":       jnp.zeros((1, hid_feats), jnp.float32),
        "gamma1":   jnp.ones((1, hid_feats), jnp.float32),
        "beta1":    jnp.zeros((1, hid_feats), jnp.float32),
        "w_self2":  glorot(ks[2], hid_feats, out_feats),
        "w_neigh2": glorot(ks[3], hid_feats, out_feats),
        "b2":       jnp.zeros((1, out_feats), jnp.float32),
    }


def make_graph(key, n_nodes, p_edge=0.15):
    """Random directed graph -> dense binary adjacency (no self loops)."""
    a = (jax.random.uniform(key, (n_nodes, n_nodes)) < p_edge).astype(jnp.float32)
    return a * (1.0 - jnp.eye(n_nodes, dtype=jnp.float32))


# ----------------------------- main --------------------------------------------

if __name__ == "__main__":
    N_NODES, IN_FEATS, HID_FEATS, OUT_FEATS = 64, 16, 32, 8

    key = jax.random.PRNGKey(0)
    k_graph, k_feat, k_param = jax.random.split(key, 3)

    adj = make_graph(k_graph, N_NODES)
    x = jax.random.normal(k_feat, (N_NODES, IN_FEATS), jnp.float32)
    params = init_params(k_param, IN_FEATS, HID_FEATS, OUT_FEATS)

    out = sage_forward(adj, x, params)
    jax.block_until_ready(out)
    assert out.shape == (N_NODES, OUT_FEATS)

    # self-check vs a plain-JAX reference mirroring the kernel's bf16 storage points
    bf = lambda t: jnp.asarray(t, jnp.bfloat16).astype(jnp.float32)
    deg = jnp.sum(adj, axis=1, keepdims=True)
    inv_deg = 1.0 / jnp.maximum(deg, 1.0)
    x32 = bf(x)
    hn = bf((adj @ x32) * inv_deg)
    z = x32 @ bf(params["w_self1"]) + hn @ bf(params["w_neigh1"]) + params["b1"]
    z = jnp.maximum(z, 0.0)
    mu = jnp.mean(z, axis=-1, keepdims=True)
    var = jnp.mean((z - mu) ** 2, axis=-1, keepdims=True)
    h = bf((z - mu) / jnp.sqrt(var + EPS) * params["gamma1"] + params["beta1"])
    p = bf(h @ bf(params["w_neigh2"]))
    ref = h @ bf(params["w_self2"]) + (adj @ p) * inv_deg + params["b2"]
    max_err = float(jnp.max(jnp.abs(out - ref)))
    assert bool(jnp.allclose(out, ref, atol=5e-2, rtol=5e-2)), max_err

    print("KERNEL_OK")
</pallas_src>

<mosaic_0001>
module attributes {stable_mosaic.version = 11 : i64} {
  func.func @_sage_fused_kernel(%arg0: i32, %arg1: i32, %arg2: memref<128x128xi8, #tpu.memory_space<vmem>>, %arg3: memref<128x1xf32, #tpu.memory_space<vmem>>, %arg4: memref<128x128xbf16, #tpu.memory_space<vmem>>, %arg5: memref<128x128xbf16, #tpu.memory_space<vmem>>, %arg6: memref<128x128xbf16, #tpu.memory_space<vmem>>, %arg7: memref<1x128xf32, #tpu.memory_space<vmem>>, %arg8: memref<1x128xf32, #tpu.memory_space<vmem>>, %arg9: memref<1x128xf32, #tpu.memory_space<vmem>>, %arg10: memref<128x128xbf16, #tpu.memory_space<vmem>>, %arg11: memref<128x128xbf16, #tpu.memory_space<vmem>>, %arg12: memref<1x128xf32, #tpu.memory_space<vmem>>, %arg13: memref<128x128xf32, #tpu.memory_space<vmem>>, %arg14: memref<128x128xbf16, #tpu.memory_space<vmem>>, %arg15: memref<128x128xbf16, #tpu.memory_space<vmem>>) attributes {dimension_semantics = [#tpu.dimension_semantics<arbitrary>, #tpu.dimension_semantics<arbitrary>], iteration_bounds = array<i64: 2, 1>, scalar_prefetch = 0 : i64, scratch_operands = 2 : i64, tpu.core_type = #tpu.core_type<tc>, window_params = [{transform_indices = @transform_0, window_bounds = array<i64: 128, 128>}, {transform_indices = @transform_1, window_bounds = array<i64: 128, 1>}, {pipeline_mode = #tpu.pipeline_mode<synchronous>, transform_indices = @transform_2, window_bounds = array<i64: 128, 128>}, {pipeline_mode = #tpu.pipeline_mode<synchronous>, transform_indices = @transform_3, window_bounds = array<i64: 128, 128>}, {pipeline_mode = #tpu.pipeline_mode<synchronous>, transform_indices = @transform_4, window_bounds = array<i64: 128, 128>}, {pipeline_mode = #tpu.pipeline_mode<synchronous>, transform_indices = @transform_5, window_bounds = array<i64: 1, 128>}, {pipeline_mode = #tpu.pipeline_mode<synchronous>, transform_indices = @transform_6, window_bounds = array<i64: 1, 128>}, {pipeline_mode = #tpu.pipeline_mode<synchronous>, transform_indices = @transform_7, window_bounds = array<i64: 1, 128>}, {pipeline_mode = #tpu.pipeline_mode<synchronous>, transform_indices = @transform_8, window_bounds = array<i64: 128, 128>}, {pipeline_mode = #tpu.pipeline_mode<synchronous>, transform_indices = @transform_9, window_bounds = array<i64: 128, 128>}, {pipeline_mode = #tpu.pipeline_mode<synchronous>, transform_indices = @transform_10, window_bounds = array<i64: 1, 128>}, {transform_indices = @transform_11, window_bounds = array<i64: 128, 128>}]} {
    %c128_i32 = arith.constant 128 : i32
    %0 = arith.muli %arg1, %c128_i32 : i32
    %1 = tpu.assume_multiple %0, 128 : i32
    %c0 = arith.constant 0 : index
    %c0_0 = arith.constant 0 : index
    %2 = vector.load %arg2[%c0, %c0_0] : memref<128x128xi8, #tpu.memory_space<vmem>>, vector<128x128xi8>
    %3 = arith.sitofp %2 : vector<128x128xi8> to vector<128x128xbf16>
    %c0_1 = arith.constant 0 : index
    %c0_2 = arith.constant 0 : index
    %4 = vector.load %arg3[%c0_1, %c0_2] : memref<128x1xf32, #tpu.memory_space<vmem>>, vector<128x1xf32>
    %c0_i32 = arith.constant 0 : i32
    %5 = arith.cmpi eq, %arg0, %c0_i32 : i32
    %6 = arith.extui %5 : i1 to i32
    %c0_i32_3 = arith.constant 0 : i32
    %7 = arith.cmpi ne, %6, %c0_i32_3 : i32
    scf.if %7 {
      %c0_5 = arith.constant 0 : index
      %c0_6 = arith.constant 0 : index
      %11 = vector.load %arg4[%c0_5, %c0_6] : memref<128x128xbf16, #tpu.memory_space<vmem>>, vector<128x128xbf16>
      %cst = arith.constant dense<0.000000e+00> : vector<128x128xf32>
      %12 = tpu.matmul %3, %11, %cst {dimension_numbers = #tpu.dot_dimension_numbers<[1], [0], [0], [1], [0, 0, 1, 1], [], []>} : vector<128x128xbf16>, vector<128x128xbf16>, vector<128x128xf32> -> vector<128x128xf32>
      %13 = vector.broadcast %4 : vector<128x1xf32> to vector<128x128xf32>
      %14 = arith.mulf %12, %13 : vector<128x128xf32>
      %15 = arith.index_cast %1 : i32 to index
      %c0_7 = arith.constant 0 : index
      %16 = vector.load %arg4[%15, %c0_7] : memref<128x128xbf16, #tpu.memory_space<vmem>>, vector<128x128xbf16>
      %c0_8 = arith.constant 0 : index
      %c0_9 = arith.constant 0 : index
      %17 = vector.load %arg5[%c0_8, %c0_9] : memref<128x128xbf16, #tpu.memory_space<vmem>>, vector<128x128xbf16>
      %cst_10 = arith.constant dense<0.000000e+00> : vector<128x128xf32>
      %18 = tpu.matmul %16, %17, %cst_10 {dimension_numbers = #tpu.dot_dimension_numbers<[1], [0], [0], [1], [0, 0, 1, 1], [], []>} : vector<128x128xbf16>, vector<128x128xbf16>, vector<128x128xf32> -> vector<128x128xf32>
      %19 = arith.truncf %14 : vector<128x128xf32> to vector<128x128xbf16>
      %c0_11 = arith.constant 0 : index
      %c0_12 = arith.constant 0 : index
      %20 = vector.load %arg6[%c0_11, %c0_12] : memref<128x128xbf16, #tpu.memory_space<vmem>>, vector<128x128xbf16>
      %cst_13 = arith.constant dense<0.000000e+00> : vector<128x128xf32>
      %21 = tpu.matmul %19, %20, %cst_13 {dimension_numbers = #tpu.dot_dimension_numbers<[1], [0], [0], [1], [0, 0, 1, 1], [], []>} : vector<128x128xbf16>, vector<128x128xbf16>, vector<128x128xf32> -> vector<128x128xf32>
      %22 = arith.addf %18, %21 : vector<128x128xf32>
      %c0_14 = arith.constant 0 : index
      %c0_15 = arith.constant 0 : index
      %23 = vector.load %arg7[%c0_14, %c0_15] : memref<1x128xf32, #tpu.memory_space<vmem>>, vector<1x128xf32>
      %24 = vector.broadcast %23 : vector<1x128xf32> to vector<128x128xf32>
      %25 = arith.addf %22, %24 : vector<128x128xf32>
      %cst_16 = arith.constant 0.000000e+00 : f32
      %26 = vector.broadcast %cst_16 : f32 to vector<128x128xf32>
      %27 = arith.maximumf %25, %26 : vector<128x128xf32>
      %cst_17 = arith.constant dense<0.000000e+00> : vector<128xf32>
      %28 = vector.multi_reduction <add>, %27, %cst_17 [1] : vector<128x128xf32> to vector<128xf32>
      %29 = vector.shape_cast %28 : vector<128xf32> to vector<128x1xf32>
      %30 = arith.mulf %27, %27 : vector<128x128xf32>
      %cst_18 = arith.constant dense<0.000000e+00> : vector<128xf32>
      %31 = vector.multi_reduction <add>, %30, %cst_18 [1] : vector<128x128xf32> to vector<128xf32>
      %32 = vector.shape_cast %31 : vector<128xf32> to vector<128x1xf32>
      %cst_19 = arith.constant 3.125000e-02 : f32
      %33 = vector.broadcast %cst_19 : f32 to vector<128x1xf32>
      %34 = arith.mulf %29, %33 : vector<128x1xf32>
      %cst_20 = arith.constant 3.125000e-02 : f32
      %35 = vector.broadcast %cst_20 : f32 to vector<128x1xf32>
      %36 = arith.mulf %32, %35 : vector<128x1xf32>
      %37 = arith.mulf %34, %34 : vector<128x1xf32>
      %38 = arith.subf %36, %37 : vector<128x1xf32>
      %cst_21 = arith.constant 0.000000e+00 : f32
      %39 = vector.broadcast %cst_21 : f32 to vector<128x1xf32>
      %40 = arith.maximumf %38, %39 : vector<128x1xf32>
      %41 = vector.broadcast %34 : vector<128x1xf32> to vector<128x128xf32>
      %42 = arith.subf %27, %41 : vector<128x128xf32>
      %cst_22 = arith.constant 9.99999974E-6 : f32
      %43 = vector.broadcast %cst_22 : f32 to vector<128x1xf32>
      %44 = arith.addf %40, %43 : vector<128x1xf32>
      %45 = math.rsqrt %44 : vector<128x1xf32>
      %46 = vector.broadcast %45 : vector<128x1xf32> to vector<128x128xf32>
      %47 = arith.mulf %42, %46 : vector<128x128xf32>
      %c0_23 = arith.constant 0 : index
      %c0_24 = arith.constant 0 : index
      %48 = vector.load %arg8[%c0_23, %c0_24] : memref<1x128xf32, #tpu.memory_space<vmem>>, vector<1x128xf32>
      %49 = vector.broadcast %48 : vector<1x128xf32> to vector<128x128xf32>
      %50 = arith.mulf %47, %49 : vector<128x128xf32>
      %c0_25 = arith.constant 0 : index
      %c0_26 = arith.constant 0 : index
      %51 = vector.load %arg9[%c0_25, %c0_26] : memref<1x128xf32, #tpu.memory_space<vmem>>, vector<1x128xf32>
      %52 = vector.broadcast %51 : vector<1x128xf32> to vector<128x128xf32>
      %53 = arith.addf %50, %52 : vector<128x128xf32>
      %54 = arith.truncf %53 : vector<128x128xf32> to vector<128x128xbf16>
      %55 = arith.index_cast %1 : i32 to index
      %c0_27 = arith.constant 0 : index
      %56 = vector.load %arg14[%55, %c0_27] : memref<128x128xbf16, #tpu.memory_space<vmem>>, vector<128x128xbf16>
      tpu.vector_store %arg14[%55, %c0_27], %54 {strides = array<i32>} : memref<128x128xbf16, #tpu.memory_space<vmem>>, vector<128x128xbf16>,
      %57 = arith.truncf %53 : vector<128x128xf32> to vector<128x128xbf16>
      %c0_28 = arith.constant 0 : index
      %c0_29 = arith.constant 0 : index
      %58 = vector.load %arg11[%c0_28, %c0_29] : memref<128x128xbf16, #tpu.memory_space<vmem>>, vector<128x128xbf16>
      %cst_30 = arith.constant dense<0.000000e+00> : vector<128x128xf32>
      %59 = tpu.matmul %57, %58, %cst_30 {dimension_numbers = #tpu.dot_dimension_numbers<[1], [0], [0], [1], [0, 0, 1, 1], [], []>} : vector<128x128xbf16>, vector<128x128xbf16>, vector<128x128xf32> -> vector<128x128xf32>
      %60 = arith.truncf %59 : vector<128x128xf32> to vector<128x128xbf16>
      %61 = arith.index_cast %1 : i32 to index
      %c0_31 = arith.constant 0 : index
      %62 = vector.load %arg15[%61, %c0_31] : memref<128x128xbf16, #tpu.memory_space<vmem>>, vector<128x128xbf16>
      tpu.vector_store %arg15[%61, %c0_31], %60 {strides = array<i32>} : memref<128x128xbf16, #tpu.memory_space<vmem>>, vector<128x128xbf16>,
    } else {
    }
    %c1_i32 = arith.constant 1 : i32
    %8 = arith.cmpi eq, %arg0, %c1_i32 : i32
    %9 = arith.extui %8 : i1 to i32
    %c0_i32_4 = arith.constant 0 : i32
    %10 = arith.cmpi ne, %9, %c0_i32_4 : i32
    scf.if %10 {
      %11 = arith.index_cast %1 : i32 to index
      %c0_5 = arith.constant 0 : index
      %12 = vector.load %arg14[%11, %c0_5] : memref<128x128xbf16, #tpu.memory_space<vmem>>, vector<128x128xbf16>
      %c0_6 = arith.constant 0 : index
      %c0_7 = arith.constant 0 : index
      %13 = vector.load %arg15[%c0_6, %c0_7] : memref<128x128xbf16, #tpu.memory_space<vmem>>, vector<128x128xbf16>
      %cst = arith.constant dense<0.000000e+00> : vector<128x128xf32>
      %14 = tpu.matmul %3, %13, %cst {dimension_numbers = #tpu.dot_dimension_numbers<[1], [0], [0], [1], [0, 0, 1, 1], [], []>} : vector<128x128xbf16>, vector<128x128xbf16>, vector<128x128xf32> -> vector<128x128xf32>
      %15 = vector.broadcast %4 : vector<128x1xf32> to vector<128x128xf32>
      %16 = arith.mulf %14, %15 : vector<128x128xf32>
      %c0_8 = arith.constant 0 : index
      %c0_9 = arith.constant 0 : index
      %17 = vector.load %arg10[%c0_8, %c0_9] : memref<128x128xbf16, #tpu.memory_space<vmem>>, vector<128x128xbf16>
      %cst_10 = arith.constant dense<0.000000e+00> : vector<128x128xf32>
      %18 = tpu.matmul %12, %17, %cst_10 {dimension_numbers = #tpu.dot_dimension_numbers<[1], [0], [0], [1], [0, 0, 1, 1], [], []>} : vector<128x128xbf16>, vector<128x128xbf16>, vector<128x128xf32> -> vector<128x128xf32>
      %19 = arith.addf %18, %16 : vector<128x128xf32>
      %c0_11 = arith.constant 0 : index
      %c0_12 = arith.constant 0 : index
      %20 = vector.load %arg12[%c0_11, %c0_12] : memref<1x128xf32, #tpu.memory_space<vmem>>, vector<1x128xf32>
      %21 = vector.broadcast %20 : vector<1x128xf32> to vector<128x128xf32>
      %22 = arith.addf %19, %21 : vector<128x128xf32>
      %c0_13 = arith.constant 0 : index
      %c0_14 = arith.constant 0 : index
      %23 = vector.load %arg13[%c0_13, %c0_14] : memref<128x128xf32, #tpu.memory_space<vmem>>, vector<128x128xf32>
      tpu.vector_store %arg13[%c0_13, %c0_14], %22 {strides = array<i32>} : memref<128x128xf32, #tpu.memory_space<vmem>>, vector<128x128xf32>,
    } else {
    }
    return
  }
  func.func @transform_0(%arg0: i32, %arg1: i32) -> (i32, i32) {
    %c0_i32 = arith.constant 0 : i32
    %c0_i32_0 = arith.constant 0 : i32
    return %arg1, %c0_i32 : i32, i32
  }
  func.func @transform_1(%arg0: i32, %arg1: i32) -> (i32, i32) {
    %c0_i32 = arith.constant 0 : i32
    %c0_i32_0 = arith.constant 0 : i32
    return %arg1, %c0_i32 : i32, i32
  }
  func.func @transform_2(%arg0: i32, %arg1: i32) -> (i32, i32) {
    %c0_i32 = arith.constant 0 : i32
    %c0_i32_0 = arith.constant 0 : i32
    %c0_i32_1 = arith.constant 0 : i32
    return %c0_i32, %c0_i32_0 : i32, i32
  }
  func.func @transform_3(%arg0: i32, %arg1: i32) -> (i32, i32) {
    %c0_i32 = arith.constant 0 : i32
    %c0_i32_0 = arith.constant 0 : i32
    %c0_i32_1 = arith.constant 0 : i32
    return %c0_i32, %c0_i32_0 : i32, i32
  }
  func.func @transform_4(%arg0: i32, %arg1: i32) -> (i32, i32) {
    %c0_i32 = arith.constant 0 : i32
    %c0_i32_0 = arith.constant 0 : i32
    %c0_i32_1 = arith.constant 0 : i32
    return %c0_i32, %c0_i32_0 : i32, i32
  }
  func.func @transform_5(%arg0: i32, %arg1: i32) -> (i32, i32) {
    %c0_i32 = arith.constant 0 : i32
    %c0_i32_0 = arith.constant 0 : i32
    %c0_i32_1 = arith.constant 0 : i32
    return %c0_i32, %c0_i32_0 : i32, i32
  }
  func.func @transform_6(%arg0: i32, %arg1: i32) -> (i32, i32) {
    %c0_i32 = arith.constant 0 : i32
    %c0_i32_0 = arith.constant 0 : i32
    %c0_i32_1 = arith.constant 0 : i32
    return %c0_i32, %c0_i32_0 : i32, i32
  }
  func.func @transform_7(%arg0: i32, %arg1: i32) -> (i32, i32) {
    %c0_i32 = arith.constant 0 : i32
    %c0_i32_0 = arith.constant 0 : i32
    %c0_i32_1 = arith.constant 0 : i32
    return %c0_i32, %c0_i32_0 : i32, i32
  }
  func.func @transform_8(%arg0: i32, %arg1: i32) -> (i32, i32) {
    %c0_i32 = arith.constant 0 : i32
    %c0_i32_0 = arith.constant 0 : i32
    %c0_i32_1 = arith.constant 0 : i32
    return %c0_i32, %c0_i32_0 : i32, i32
  }
  func.func @transform_9(%arg0: i32, %arg1: i32) -> (i32, i32) {
    %c0_i32 = arith.constant 0 : i32
    %c0_i32_0 = arith.constant 0 : i32
    %c0_i32_1 = arith.constant 0 : i32
    return %c0_i32, %c0_i32_0 : i32, i32
  }
  func.func @transform_10(%arg0: i32, %arg1: i32) -> (i32, i32) {
    %c0_i32 = arith.constant 0 : i32
    %c0_i32_0 = arith.constant 0 : i32
    %c0_i32_1 = arith.constant 0 : i32
    return %c0_i32, %c0_i32_0 : i32, i32
  }
  func.func @transform_11(%arg0: i32, %arg1: i32) -> (i32, i32) {
    %0 = arith.muli %arg0, %arg1 : i32
    %c0_i32 = arith.constant 0 : i32
    %c0_i32_0 = arith.constant 0 : i32
    return %0, %c0_i32 : i32, i32
  }
}

</mosaic_0001>

<llo_original>
// kernel: tpu_custom_call.1
$region0: #{tpu_custom_call.1}
  #allocation0 [shape = 'u32[]', space=smem, size = 0x4, offset = 0x4, fixed_abs, tag = 'smem constant byte address 0x4 - core index']
  #allocation1 [shape = 'u32[144,128]{1,0:T(1,128)}', space=vmem, size = 0x12000, scoped, tag = 'internal scratch']
  #allocation2 [shape = 'bf16[128,128]{1,0:T(16,128)(2,1)}', space=vmem, size = 0x8000, scoped, tag = 'scratch operand']
  #allocation3 [shape = 'bf16[128,128]{1,0:T(16,128)(2,1)}', space=vmem, size = 0x8000, scoped, tag = 'scratch operand']
  %s0 = inlined_call_operand.hbm [shape: s8[128,128], index: 0, kind: input, shape index: {}]
  %s1 = inlined_call_operand.vmem [shape: f32[128,1], index: 1, kind: input, shape index: {}]
  %s2 = inlined_call_operand.vmem [shape: bf16[128,128], index: 2, kind: input, shape index: {}]
  %s3 = inlined_call_operand.vmem [shape: bf16[128,128], index: 3, kind: input, shape index: {}]
  %s4 = inlined_call_operand.hbm [shape: bf16[128,128], index: 4, kind: input, shape index: {}]
  %s5 = inlined_call_operand.vmem [shape: f32[1,128], index: 5, kind: input, shape index: {}]
  %s6 = inlined_call_operand.vmem [shape: f32[1,128], index: 6, kind: input, shape index: {}]
  %s7 = inlined_call_operand.vmem [shape: f32[1,128], index: 7, kind: input, shape index: {}]
  %s8 = inlined_call_operand.hbm [shape: bf16[128,128], index: 8, kind: input, shape index: {}]
  %s9 = inlined_call_operand.hbm [shape: bf16[128,128], index: 9, kind: input, shape index: {}]
  %s10 = inlined_call_operand.vmem [shape: f32[1,128], index: 10, kind: input, shape index: {}]
  %s11 = inlined_call_operand.hbm [shape: f32[128,128], index: 11, kind: output, shape index: {}]
  %s12 = sld [smem:[#allocation0]]
  $region101: #{tpu_custom_call.1} parent=0
    _
  %s14 = ssub.s32 1, %s12
  %s15 = scalar_select 0, %s14, %s12
  $region1: #{tpu_custom_call.1} parent=0
    #allocation4 [shape = 'u8[16384]{0}', space=vmem, size = 0x4000, scoped, tag = 'input window, operand 0, single buffered']
    #allocation5 [shape = 's32[2]{0}', space=sflag, size = 0x8, scoped, tag = 'scoped memory for tpu_custom_call.1']
    #allocation6 [shape = 's32[2]{0}', space=sflag, size = 0x8, scoped, tag = 'scoped memory for tpu_custom_call.1']
    #allocation7 [shape = 'u8[32768]{0}', space=vmem, size = 0x8000, scoped, tag = 'input window, operand 4, single buffered']
    #allocation8 [shape = 's32[1]{0}', space=sflag, size = 0x4, scoped, tag = 'scoped memory for tpu_custom_call.1']
    #allocation9 [shape = 'u8[32768]{0}', space=vmem, size = 0x8000, scoped, tag = 'input window, operand 8, single buffered']
    #allocation10 [shape = 'u8[32768]{0}', space=vmem, size = 0x8000, scoped, tag = 'input window, operand 9, single buffered']
    #allocation11 [shape = 's32[1]{0}', space=sflag, size = 0x4, scoped, tag = 'scoped memory for tpu_custom_call.1']
    #allocation12 [shape = 'u8[131072]{0}', space=vmem, size = 0x20000, scoped, tag = 'output window, operand 0']
    %16 = vsyncpa [#allocation5], 0
    %17 = vsyncpa [#allocation8], 0
    %18 = vsyncpa [#allocation11], 0
    %19 = vsyncpa [#allocation6], 0
    %s20 = scalar_lea.sflag [#allocation6], 1
    %21 = vsyncpa %s20, 0
    loop: start=0, step=1, limit=4
    $region2: #{tpu_custom_call.1} parent=1 // loop_pre_header
      _
    $region3: #{tpu_custom_call.1} parent=1 // loop_header
      %s23 = sphi 0, %s27
      %p24 = scmp.ge.s32.totalorder %s23, 4
      %s30 = sphi 0, %s42
      %s31 = sphi 0, %s38
      %s32 = sphi 0, %s30
      %s33 = sphi 0, %s31
      %s34 = sphi 0, %s32
      %s35 = sphi 0, %s33
      %s45 = sphi 0, %s47
      %s48 = sphi 0, %s45
      %s49 = sphi 0, %s48
      %s65 = sphi 0, %s49
      %s71 = sphi 0, %s73
      %s74 = sphi 0, %s71
      %s75 = sphi 0, %s74
      %s91 = sphi 0, %s75
      %s95 = sphi 0, %s95
      %s97 = sphi 0, %s95
      %s98 = sphi 0, %s97
      %s112 = sphi 0, %s98
      %s116 = sphi 0, %s116
      %s118 = sphi 0, %s116
      %s119 = sphi 0, %s118
      %s133 = sphi 0, %s119
      %s137 = sphi 0, %s137
      %s139 = sphi 0, %s137
      %s140 = sphi 0, %s139
      %s154 = sphi 0, %s140
      %s158 = sphi 0, %s158
      %s160 = sphi 0, %s158
      %s161 = sphi 0, %s160
      %s175 = sphi 0, %s161
      %s179 = sphi 0, %s179
      %s181 = sphi 0, %s179
      %s182 = sphi 0, %s181
      %s196 = sphi 0, %s182
      %s200 = sphi 0, %s200
      %s202 = sphi 0, %s200
      %s203 = sphi 0, %s202
      %s217 = sphi 0, %s203
      %s221 = sphi 0, %s221
      %s223 = sphi 0, %s221
      %s224 = sphi 0, %s223
      %s238 = sphi 0, %s224
      %s242 = sphi 0, %s242
      %s244 = sphi 0, %s242
      %s245 = sphi 0, %s244
      %s259 = sphi 0, %s245
      %s263 = sphi 0, %s263
      %s265 = sphi 0, %s263
      %s266 = sphi 0, %s265
      %s280 = sphi 0, %s266
      %s288 = sphi 0, %s290
      %s291 = sphi 0, %s288
      %s292 = sphi 0, %s291
      %s308 = sphi 0, %s292
    $region4: #{tpu_custom_call.1} parent=1 // loop_header_branch
      %26 = sbr.rel (%p24) target = $region8
    $region5: #{tpu_custom_call.1} parent=1 // loop_body
      %s28 = ssub.s32 %s23, 1
      %s29 = ssub.s32 %s23, 2
      %s36 = sadd.s32 1, %s31
      %p37 = scmp.ge.s32.totalorder %s36, 1
      %s38 = scalar_select %p37, 0, %s36
      %s39 = sadd.s32 1, %s30
      %s40 = scalar_select %p37, %s39, %s30
      %p41 = scmp.ge.s32.totalorder %s40, 2
      %s42 = scalar_select %p41, 0, %s40
      %s43 = ssub.s32 %s31, %s38
      %p44 = scmp.eq.s32.totalorder %s43, 0
      %s46 = sadd.s32 %s45, 1
      %s47 = scalar_select %p44, %s45, %s46
      %p50 = pneg %p44
      %p51 = scmp.eq.s32.totalorder %s23, 1
      %p52 = por %p50, %p51
      %p53 = scmp.ne.s32.totalorder %s45, %s48
      %p54 = scmp.eq.s32.totalorder %s23, 0
      %p55 = por %p53, %p54
      %p56 = scmp.ne.s32.totalorder %s45, %s48
      %p57 = scmp.eq.s32.totalorder %s28, 1
      %p58 = por %p56, %p57
      %p59 = scmp.ne.s32.totalorder %s48, %s49
      %p60 = scmp.eq.s32.totalorder %s28, 0
      %p61 = por %p59, %p60
      %p62 = scmp.ne.s32.totalorder %s48, %s49
      %p63 = scmp.eq.s32.totalorder %s29, 1
      %p64 = por %p62, %p63
      %p66 = scmp.ne.s32.totalorder %s49, %s65
      %p67 = scmp.eq.s32.totalorder %s29, 0
      %p68 = por %p66, %p67
      %s69 = ssub.s32 %s31, %s38
      %p70 = scmp.eq.s32.totalorder %s69, 0
      %s72 = sadd.s32 %s71, 1
      %s73 = scalar_select %p70, %s71, %s72
      %p76 = pneg %p70
      %p77 = scmp.eq.s32.totalorder %s23, 1
      %p78 = por %p76, %p77
      %p79 = scmp.ne.s32.totalorder %s71, %s74
      %p80 = scmp.eq.s32.totalorder %s23, 0
      %p81 = por %p79, %p80
      %p82 = scmp.ne.s32.totalorder %s71, %s74
      %p83 = scmp.eq.s32.totalorder %s28, 1
      %p84 = por %p82, %p83
      %p85 = scmp.ne.s32.totalorder %s74, %s75
      %p86 = scmp.eq.s32.totalorder %s28, 0
      %p87 = por %p85, %p86
      %p88 = scmp.ne.s32.totalorder %s74, %s75
      %p89 = scmp.eq.s32.totalorder %s29, 1
      %p90 = por %p88, %p89
      %p92 = scmp.ne.s32.totalorder %s75, %s91
      %p93 = scmp.eq.s32.totalorder %s29, 0
      %p94 = por %p92, %p93
      %s96 = sadd.s32 %s95, 1
      %p99 = scmp.eq.s32.totalorder %s23, 1
      %p100 = scmp.ne.s32.totalorder %s95, %s97
      %p101 = scmp.eq.s32.totalorder %s23, 0
      %p102 = por %p100, %p101
      %p103 = scmp.ne.s32.totalorder %s95, %s97
      %p104 = scmp.eq.s32.totalorder %s28, 1
      %p105 = por %p103, %p104
      %p106 = scmp.ne.s32.totalorder %s97, %s98
      %p107 = scmp.eq.s32.totalorder %s28, 0
      %p108 = por %p106, %p107
      %p109 = scmp.ne.s32.totalorder %s97, %s98
      %p110 = scmp.eq.s32.totalorder %s29, 1
      %p111 = por %p109, %p110
      %p113 = scmp.ne.s32.totalorder %s98, %s112
      %p114 = scmp.eq.s32.totalorder %s29, 0
      %p115 = por %p113, %p114
      %s117 = sadd.s32 %s116, 1
      %p120 = scmp.eq.s32.totalorder %s23, 1
      %p121 = scmp.ne.s32.totalorder %s116, %s118
      %p122 = scmp.eq.s32.totalorder %s23, 0
      %p123 = por %p121, %p122
      %p124 = scmp.ne.s32.totalorder %s116, %s118
      %p125 = scmp.eq.s32.totalorder %s28, 1
      %p126 = por %p124, %p125
      %p127 = scmp.ne.s32.totalorder %s118, %s119
      %p128 = scmp.eq.s32.totalorder %s28, 0
      %p129 = por %p127, %p128
      %p130 = scmp.ne.s32.totalorder %s118, %s119
      %p131 = scmp.eq.s32.totalorder %s29, 1
      %p132 = por %p130, %p131
      %p134 = scmp.ne.s32.totalorder %s119, %s133
      %p135 = scmp.eq.s32.totalorder %s29, 0
      %p136 = por %p134, %p135
      %s138 = sadd.s32 %s137, 1
      %p141 = scmp.eq.s32.totalorder %s23, 1
      %p142 = scmp.ne.s32.totalorder %s137, %s139
      %p143 = scmp.eq.s32.totalorder %s23, 0
      %p144 = por %p142, %p143
      %p145 = scmp.ne.s32.totalorder %s137, %s139
      %p146 = scmp.eq.s32.totalorder %s28, 1
      %p147 = por %p145, %p146
      %p148 = scmp.ne.s32.totalorder %s139, %s140
      %p149 = scmp.eq.s32.totalorder %s28, 0
      %p150 = por %p148, %p149
      %p151 = scmp.ne.s32.totalorder %s139, %s140
      %p152 = scmp.eq.s32.totalorder %s29, 1
      %p153 = por %p151, %p152
      %p155 = scmp.ne.s32.totalorder %s140, %s154
      %p156 = scmp.eq.s32.totalorder %s29, 0
      %p157 = por %p155, %p156
      %s159 = sadd.s32 %s158, 1
      %p162 = scmp.eq.s32.totalorder %s23, 1
      %p163 = scmp.ne.s32.totalorder %s158, %s160
      %p164 = scmp.eq.s32.totalorder %s23, 0
      %p165 = por %p163, %p164
      %p166 = scmp.ne.s32.totalorder %s158, %s160
      %p167 = scmp.eq.s32.totalorder %s28, 1
      %p168 = por %p166, %p167
      %p169 = scmp.ne.s32.totalorder %s160, %s161
      %p170 = scmp.eq.s32.totalorder %s28, 0
      %p171 = por %p169, %p170
      %p172 = scmp.ne.s32.totalorder %s160, %s161
      %p173 = scmp.eq.s32.totalorder %s29, 1
      %p174 = por %p172, %p173
      %p176 = scmp.ne.s32.totalorder %s161, %s175
      %p177 = scmp.eq.s32.totalorder %s29, 0
      %p178 = por %p176, %p177
      %s180 = sadd.s32 %s179, 1
      %p183 = scmp.eq.s32.totalorder %s23, 1
      %p184 = scmp.ne.s32.totalorder %s179, %s181
      %p185 = scmp.eq.s32.totalorder %s23, 0
      %p186 = por %p184, %p185
      %p187 = scmp.ne.s32.totalorder %s179, %s181
      %p188 = scmp.eq.s32.totalorder %s28, 1
      %p189 = por %p187, %p188
      %p190 = scmp.ne.s32.totalorder %s181, %s182
      %p191 = scmp.eq.s32.totalorder %s28, 0
      %p192 = por %p190, %p191
      %p193 = scmp.ne.s32.totalorder %s181, %s182
      %p194 = scmp.eq.s32.totalorder %s29, 1
      %p195 = por %p193, %p194
      %p197 = scmp.ne.s32.totalorder %s182, %s196
      %p198 = scmp.eq.s32.totalorder %s29, 0
      %p199 = por %p197, %p198
      %s201 = sadd.s32 %s200, 1
      %p204 = scmp.eq.s32.totalorder %s23, 1
      %p205 = scmp.ne.s32.totalorder %s200, %s202
      %p206 = scmp.eq.s32.totalorder %s23, 0
      %p207 = por %p205, %p206
      %p208 = scmp.ne.s32.totalorder %s200, %s202
      %p209 = scmp.eq.s32.totalorder %s28, 1
      %p210 = por %p208, %p209
      %p211 = scmp.ne.s32.totalorder %s202, %s203
      %p212 = scmp.eq.s32.totalorder %s28, 0
      %p213 = por %p211, %p212
      %p214 = scmp.ne.s32.totalorder %s202, %s203
      %p215 = scmp.eq.s32.totalorder %s29, 1
      %p216 = por %p214, %p215
      %p218 = scmp.ne.s32.totalorder %s203, %s217
      %p219 = scmp.eq.s32.totalorder %s29, 0
      %p220 = por %p218, %p219
      %s222 = sadd.s32 %s221, 1
      %p225 = scmp.eq.s32.totalorder %s23, 1
      %p226 = scmp.ne.s32.totalorder %s221, %s223
      %p227 = scmp.eq.s32.totalorder %s23, 0
      %p228 = por %p226, %p227
      %p229 = scmp.ne.s32.totalorder %s221, %s223
      %p230 = scmp.eq.s32.totalorder %s28, 1
      %p231 = por %p229, %p230
      %p232 = scmp.ne.s32.totalorder %s223, %s224
      %p233 = scmp.eq.s32.totalorder %s28, 0
      %p234 = por %p232, %p233
      %p235 = scmp.ne.s32.totalorder %s223, %s224
      %p236 = scmp.eq.s32.totalorder %s29, 1
      %p237 = por %p235, %p236
      %p239 = scmp.ne.s32.totalorder %s224, %s238
      %p240 = scmp.eq.s32.totalorder %s29, 0
      %p241 = por %p239, %p240
      %s243 = sadd.s32 %s242, 1
      %p246 = scmp.eq.s32.totalorder %s23, 1
      %p247 = scmp.ne.s32.totalorder %s242, %s244
      %p248 = scmp.eq.s32.totalorder %s23, 0
      %p249 = por %p247, %p248
      %p250 = scmp.ne.s32.totalorder %s242, %s244
      %p251 = scmp.eq.s32.totalorder %s28, 1
      %p252 = por %p250, %p251
      %p253 = scmp.ne.s32.totalorder %s244, %s245
      %p254 = scmp.eq.s32.totalorder %s28, 0
      %p255 = por %p253, %p254
      %p256 = scmp.ne.s32.totalorder %s244, %s245
      %p257 = scmp.eq.s32.totalorder %s29, 1
      %p258 = por %p256, %p257
      %p260 = scmp.ne.s32.totalorder %s245, %s259
      %p261 = scmp.eq.s32.totalorder %s29, 0
      %p262 = por %p260, %p261
      %s264 = sadd.s32 %s263, 1
      %p267 = scmp.eq.s32.totalorder %s23, 1
      %p268 = scmp.ne.s32.totalorder %s263, %s265
      %p269 = scmp.eq.s32.totalorder %s23, 0
      %p270 = por %p268, %p269
      %p271 = scmp.ne.s32.totalorder %s263, %s265
      %p272 = scmp.eq.s32.totalorder %s28, 1
      %p273 = por %p271, %p272
      %p274 = scmp.ne.s32.totalorder %s265, %s266
      %p275 = scmp.eq.s32.totalorder %s28, 0
      %p276 = por %p274, %p275
      %p277 = scmp.ne.s32.totalorder %s265, %s266
      %p278 = scmp.eq.s32.totalorder %s29, 1
      %p279 = por %p277, %p278
      %p281 = scmp.ne.s32.totalorder %s266, %s280
      %p282 = scmp.eq.s32.totalorder %s29, 0
      %p283 = por %p281, %p282
      %s284 = smul.u32 %s30, %s31
      %s285 = smul.u32 %s42, %s38
      %s286 = ssub.s32 %s284, %s285
      %p287 = scmp.eq.s32.totalorder %s286, 0
      %s289 = sadd.s32 %s288, 1
      %s290 = scalar_select %p287, %s288, %s289
      %p293 = pneg %p287
      %p294 = scmp.eq.s32.totalorder %s23, 1
      %p295 = por %p293, %p294
      %p296 = scmp.ne.s32.totalorder %s288, %s291
      %p297 = scmp.eq.s32.totalorder %s23, 0
      %p298 = por %p296, %p297
      %p299 = scmp.ne.s32.totalorder %s288, %s291
      %p300 = scmp.eq.s32.totalorder %s28, 1
      %p301 = por %p299, %p300
      %p302 = scmp.ne.s32.totalorder %s291, %s292
      %p303 = scmp.eq.s32.totalorder %s28, 0
      %p304 = por %p302, %p303
      %p305 = scmp.ne.s32.totalorder %s291, %s292
      %p306 = scmp.eq.s32.totalorder %s29, 1
      %p307 = por %p305, %p306
      %p309 = scmp.ne.s32.totalorder %s292, %s308
      %p310 = scmp.eq.s32.totalorder %s29, 0
      %p311 = por %p309, %p310
      %p312 = scmp.le.s32.totalorder 1, %s23
      %p313 = scmp.lt.s32.totalorder %s23, 3
      %p314 = pnand %p312, %p313
      %p315 = pneg %p314
      // Predicated region
      $region9: #{tpu_custom_call.1} parent=5 // pred_check
        _
      $region10: #{tpu_custom_call.1} parent=5 // pred_check_branch
        %317 = sbr.rel (%p314) target = $region12
      $region11: #{tpu_custom_call.1} parent=5 // pred_region
        %s318 = ssub.s32 %s23, 1
        // Predicated region
        $region13: #{tpu_custom_call.1} parent=11 // pred_check
          %p319 = pneg %p61
        $region14: #{tpu_custom_call.1} parent=11 // pred_check_branch
          %321 = sbr.rel (%p319) target = $region16
        $region15: #{tpu_custom_call.1} parent=11 // pred_region
          %s322 = smul.u32 4, %s33
          %s324 = ssub.s32 512, 512
          %325 = vsyncadd [#allocation5], %s324
          %s326 = smul.addr %s322, 128
          %s327 = scalar_lea.hbm %s0, %s326
          %s328 = sshll.u32 [#allocation4], 4
          %s329 = int_to_ptr.vmem [resolvable:$true] %s328
          %334 = dma.hbm_to_vmem [thread:$0]  %s327, 512, %s329, [#allocation5], 128, 128, 8
        $region16: #{tpu_custom_call.1} parent=11 // pred_fallthru
          _
        // Predicated region
        $region17: #{tpu_custom_call.1} parent=11 // pred_check
          %p335 = pneg %p87
        $region18: #{tpu_custom_call.1} parent=11 // pred_check_branch
          %337 = sbr.rel (%p335) target = $region20
        $region19: #{tpu_custom_call.1} parent=11 // pred_region
          %s338 = smul.u32 16, %s33
          %p339 = scmp.lt.s32.totalorder %s338, 15
          %s340 = scalar_select %p339, %s338, 15
          %s341 = smul.addr %s340, 8
          %s342 = scalar_lea.vmem %s1, %s341
          %s343 = smul.u32 16, %s33
        $region20: #{tpu_custom_call.1} parent=11 // pred_fallthru
          _
        // Predicated region
        $region21: #{tpu_custom_call.1} parent=11 // pred_check
          %p344 = pneg %p108
        $region22: #{tpu_custom_call.1} parent=11 // pred_check_branch
          %346 = sbr.rel (%p344) target = $region24
        $region23: #{tpu_custom_call.1} parent=11 // pred_region
          _
        $region24: #{tpu_custom_call.1} parent=11 // pred_fallthru
          _
        // Predicated region
        $region25: #{tpu_custom_call.1} parent=11 // pred_check
          %p347 = pneg %p129
        $region26: #{tpu_custom_call.1} parent=11 // pred_check_branch
          %349 = sbr.rel (%p347) target = $region28
        $region27: #{tpu_custom_call.1} parent=11 // pred_region
          _
        $region28: #{tpu_custom_call.1} parent=11 // pred_fallthru
          _
        // Predicated region
        $region29: #{tpu_custom_call.1} parent=11 // pred_check
          %p350 = pneg %p150
        $region30: #{tpu_custom_call.1} parent=11 // pred_check_branch
          %352 = sbr.rel (%p350) target = $region32
        $region31: #{tpu_custom_call.1} parent=11 // pred_region
          %s354 = ssub.s32 1024, 1024
          %355 = vsyncadd [#allocation8], %s354
          %s356 = sshll.u32 [#allocation7], 4
          %s357 = int_to_ptr.vmem [resolvable:$true] %s356
          %362 = dma.hbm_to_vmem [thread:$0]  %s4, 1024, %s357, [#allocation8], 64, 64, 4
        $region32: #{tpu_custom_call.1} parent=11 // pred_fallthru
          _
        // Predicated region
        $region33: #{tpu_custom_call.1} parent=11 // pred_check
          %p363 = pneg %p171
        $region34: #{tpu_custom_call.1} parent=11 // pred_check_branch
          %365 = sbr.rel (%p363) target = $region36
        $region35: #{tpu_custom_call.1} parent=11 // pred_region
          _
        $region36: #{tpu_custom_call.1} parent=11 // pred_fallthru
          _
        // Predicated region
        $region37: #{tpu_custom_call.1} parent=11 // pred_check
          %p366 = pneg %p192
        $region38: #{tpu_custom_call.1} parent=11 // pred_check_branch
          %368 = sbr.rel (%p366) target = $region40
        $region39: #{tpu_custom_call.1} parent=11 // pred_region
          _
        $region40: #{tpu_custom_call.1} parent=11 // pred_fallthru
          _
        // Predicated region
        $region41: #{tpu_custom_call.1} parent=11 // pred_check
          %p369 = pneg %p213
        $region42: #{tpu_custom_call.1} parent=11 // pred_check_branch
          %371 = sbr.rel (%p369) target = $region44
        $region43: #{tpu_custom_call.1} parent=11 // pred_region
          _
        $region44: #{tpu_custom_call.1} parent=11 // pred_fallthru
          _
        // Predicated region
        $region45: #{tpu_custom_call.1} parent=11 // pred_check
          %p372 = pneg %p234
        $region46: #{tpu_custom_call.1} parent=11 // pred_check_branch
          %374 = sbr.rel (%p372) target = $region48
        $region47: #{tpu_custom_call.1} parent=11 // pred_region
          %s376 = ssub.s32 1024, 1024
          %377 = vsyncadd [#allocation8], %s376
          %s378 = sshll.u32 [#allocation9], 4
          %s379 = int_to_ptr.vmem [resolvable:$true] %s378
          %384 = dma.hbm_to_vmem [thread:$0]  %s8, 1024, %s379, [#allocation8], 64, 64, 4
        $region48: #{tpu_custom_call.1} parent=11 // pred_fallthru
          _
        // Predicated region
        $region49: #{tpu_custom_call.1} parent=11 // pred_check
          %p385 = pneg %p255
        $region50: #{tpu_custom_call.1} parent=11 // pred_check_branch
          %387 = sbr.rel (%p385) target = $region52
        $region51: #{tpu_custom_call.1} parent=11 // pred_region
          %s389 = ssub.s32 1024, 1024
          %390 = vsyncadd [#allocation11], %s389
          %s391 = sshll.u32 [#allocation10], 4
          %s392 = int_to_ptr.vmem [resolvable:$true] %s391
          %397 = dma.hbm_to_vmem [thread:$0]  %s9, 1024, %s392, [#allocation11], 64, 64, 4
        $region52: #{tpu_custom_call.1} parent=11 // pred_fallthru
          _
        // Predicated region
        $region53: #{tpu_custom_call.1} parent=11 // pred_check
          %p398 = pneg %p276
        $region54: #{tpu_custom_call.1} parent=11 // pred_check_branch
          %400 = sbr.rel (%p398) target = $region56
        $region55: #{tpu_custom_call.1} parent=11 // pred_region
          _
        $region56: #{tpu_custom_call.1} parent=11 // pred_fallthru
          _
      $region12: #{tpu_custom_call.1} parent=5 // pred_fallthru
        _
      %p401 = scmp.lt.s32.totalorder %s23, 2
      // Predicated region
      $region57: #{tpu_custom_call.1} parent=5 // pred_check
        %p402 = pneg %p401
      $region58: #{tpu_custom_call.1} parent=5 // pred_check_branch
        %404 = sbr.rel (%p402) target = $region60
      $region59: #{tpu_custom_call.1} parent=5 // pred_region
        _
      $region60: #{tpu_custom_call.1} parent=5 // pred_fallthru
        _
      %p405 = scmp.le.s32.totalorder 1, %s23
      %p406 = scmp.lt.s32.totalorder %s23, 3
      %p407 = pnand %p405, %p406
      %p408 = pneg %p407
      // Predicated region
      $region61: #{tpu_custom_call.1} parent=5 // pred_check
        _
      $region62: #{tpu_custom_call.1} parent=5 // pred_check_branch
        %410 = sbr.rel (%p407) target = $region64
      $region63: #{tpu_custom_call.1} parent=5 // pred_region
        %s411 = ssub.s32 %s23, 1
        // Predicated region
        $region65: #{tpu_custom_call.1} parent=63 // pred_check
          %p412 = pneg %p61
        $region66: #{tpu_custom_call.1} parent=63 // pred_check_branch
          %414 = sbr.rel (%p412) target = $region68
        $region67: #{tpu_custom_call.1} parent=63 // pred_region
          %415 = dma.done [#allocation5], 512
        $region68: #{tpu_custom_call.1} parent=63 // pred_fallthru
          _
        // Predicated region
        $region69: #{tpu_custom_call.1} parent=63 // pred_check
          %p416 = pneg %p150
        $region70: #{tpu_custom_call.1} parent=63 // pred_check_branch
          %418 = sbr.rel (%p416) target = $region72
        $region71: #{tpu_custom_call.1} parent=63 // pred_region
          %419 = dma.done [#allocation8], 1024
        $region72: #{tpu_custom_call.1} parent=63 // pred_fallthru
          _
        // Predicated region
        $region73: #{tpu_custom_call.1} parent=63 // pred_check
          %p420 = pneg %p234
        $region74: #{tpu_custom_call.1} parent=63 // pred_check_branch
          %422 = sbr.rel (%p420) target = $region76
        $region75: #{tpu_custom_call.1} parent=63 // pred_region
          %423 = dma.done [#allocation8], 1024
        $region76: #{tpu_custom_call.1} parent=63 // pred_fallthru
          _
        // Predicated region
        $region77: #{tpu_custom_call.1} parent=63 // pred_check
          %p424 = pneg %p255
        $region78: #{tpu_custom_call.1} parent=63 // pred_check_branch
          %426 = sbr.rel (%p424) target = $region80
        $region79: #{tpu_custom_call.1} parent=63 // pred_region
          %427 = dma.done [#allocation11], 1024
        $region80: #{tpu_custom_call.1} parent=63 // pred_fallthru
          _
        %p428 = pneg %p61
        %p429 = pneg %p58
        %s430 = smul.u32 16, %s33
        %p431 = scmp.lt.s32.totalorder %s430, 15
        %s432 = scalar_select %p431, %s430, 15
        %s433 = smul.addr %s432, 8
        %s434 = scalar_lea.vmem %s1, %s433
        %p435 = pneg %p87
        %p436 = pneg %p84
        %p437 = pneg %p108
        %p438 = pneg %p105
        %p439 = pneg %p129
        %p440 = pneg %p126
        %p441 = pneg %p150
        %p442 = pneg %p147
        %p443 = pneg %p171
        %p444 = pneg %p168
        %p445 = pneg %p192
        %p446 = pneg %p189
        %p447 = pneg %p213
        %p448 = pneg %p210
        %p449 = pneg %p234
        %p450 = pneg %p231
        %p451 = pneg %p255
        %p452 = pneg %p252
        %p453 = pneg %p276
        %p454 = pneg %p273
        %p455 = pneg %p304
        %p456 = pneg %p301
        %s457 = sand.u32 %s291, 1
        %s458 = scalar_lea.sflag [#allocation6], %s457
        %s459 = sand.u32 %s291, 1
        %s460 = smul.addr %s459, 128
        %s461 = scalar_lea.vmem [#allocation12], %s460
        %s462 = smul.u32 4, %s33
        %s463 = smul.u32 16, %s33
        %p464 = scmp.lt.s32.totalorder %s463, 15
        %s465 = scalar_select %p464, %s463, 15
        %s466 = smul.addr %s465, 8
        %s467 = scalar_lea.vmem %s1, %s466
        %s468 = smul.u32 16, %s33
        %s469 = smul.u32 %s32, %s33
        %s470 = smul.u32 16, %s469
        %s472 = smul.u32 %s33, 128
        %v473 = vld [vmem:[#allocation4] sm:$0xff]
        %v474 = vld [vmem:[#allocation4 + $0x8] sm:$0xff]
        %v475 = vld [vmem:[#allocation4 + $0x10] sm:$0xff]
        %v476 = vld [vmem:[#allocation4 + $0x18] sm:$0xff]
        %v477 = vunpack.c.l.s8.bf16 %v473
        %v478 = vunpack.c.h.s8.bf16 %v473
        %v479 = vunpack.c.l.s8.bf16 %v474
        %v480 = vunpack.c.h.s8.bf16 %v474
        %v481 = vunpack.c.l.s8.bf16 %v475
        %v482 = vunpack.c.h.s8.bf16 %v475
        %v483 = vunpack.c.l.s8.bf16 %v476
        %v484 = vunpack.c.h.s8.bf16 %v476
        %v485 = vld [vmem:[%s467] sm:$0xff]
        %v486 = vld [vmem:[%s467 + $0x8] sm:$0xff]
        %v487 = vld [vmem:[%s467 + $0x10] sm:$0xff]
        %v488 = vld [vmem:[%s467 + $0x18] sm:$0xff]
        %v489 = vld [vmem:[%s467 + $0x20] sm:$0xff]
        %v490 = vld [vmem:[%s467 + $0x28] sm:$0xff]
        %v491 = vld [vmem:[%s467 + $0x30] sm:$0xff]
        %v492 = vld [vmem:[%s467 + $0x38] sm:$0xff]
        %v493 = vld [vmem:[%s467 + $0x40] sm:$0xff]
        %v494 = vld [vmem:[%s467 + $0x48] sm:$0xff]
        %v495 = vld [vmem:[%s467 + $0x50] sm:$0xff]
        %v496 = vld [vmem:[%s467 + $0x58] sm:$0xff]
        %v497 = vld [vmem:[%s467 + $0x60] sm:$0xff]
        %v498 = vld [vmem:[%s467 + $0x68] sm:$0xff]
        %v499 = vld [vmem:[%s467 + $0x70] sm:$0xff]
        %v500 = vld [vmem:[%s467 + $0x78] sm:$0xff]
        %p501 = scmp.eq.s32.totalorder %s32, 0
        // Predicated region
        $region81: #{tpu_custom_call.1} parent=63 // pred_check
          %p502 = pneg %p501
        $region82: #{tpu_custom_call.1} parent=63 // pred_check_branch
          %504 = sbr.rel (%p502) target = $region84
        $region83: #{tpu_custom_call.1} parent=63 // pred_region
          %v505 = vld [vmem:[%s2] sm:$0xf]
          %v506 = vld [vmem:[%s2 + $0x4] sm:$0xf]
          %v507 = vld [vmem:[%s2 + $0x8] sm:$0xf]
          %v508 = vld [vmem:[%s2 + $0xc] sm:$0xf]
          %v509 = vld [vmem:[%s2 + $0x10] sm:$0xf]
          %v510 = vld [vmem:[%s2 + $0x14] sm:$0xf]
          %v511 = vld [vmem:[%s2 + $0x18] sm:$0xf]
          %v512 = vld [vmem:[%s2 + $0x1c] sm:$0xf]
          %v513 = vld [vmem:[%s2 + $0x20] sm:$0xf]
          %v514 = vld [vmem:[%s2 + $0x24] sm:$0xf]
          %v515 = vld [vmem:[%s2 + $0x28] sm:$0xf]
          %v516 = vld [vmem:[%s2 + $0x2c] sm:$0xf]
          %v517 = vld [vmem:[%s2 + $0x30] sm:$0xf]
          %v518 = vld [vmem:[%s2 + $0x34] sm:$0xf]
          %v519 = vld [vmem:[%s2 + $0x38] sm:$0xf]
          %v520 = vld [vmem:[%s2 + $0x3c] sm:$0xf]
          %v537 = vunpack.c.l.b16 %v505
          %v538 = vunpack.c.l.b16 %v506
          %v539 = vunpack.c.l.b16 %v507
          %v540 = vunpack.c.l.b16 %v508
          %v541 = vunpack.c.l.b16 %v509
          %v542 = vunpack.c.l.b16 %v510
          %v543 = vunpack.c.l.b16 %v511
          %v544 = vunpack.c.l.b16 %v512
          %v545 = vunpack.c.l.b16 %v513
          %v546 = vunpack.c.l.b16 %v514
          %v547 = vunpack.c.l.b16 %v515
          %v548 = vunpack.c.l.b16 %v516
          %v549 = vunpack.c.l.b16 %v517
          %v550 = vunpack.c.l.b16 %v518
          %v551 = vunpack.c.l.b16 %v519
          %v552 = vunpack.c.l.b16 %v520
          %v553 = vpack.c.b16 %v538, %v537
          %v554 = vpack.c.b16 %v540, %v539
          %v555 = vpack.c.b16 %v542, %v541
          %v556 = vpack.c.b16 %v544, %v543
          %v557 = vpack.c.b16 %v546, %v545
          %v558 = vpack.c.b16 %v548, %v547
          %v559 = vpack.c.b16 %v550, %v549
          %v560 = vpack.c.b16 %v552, %v551
          %569 = vmatprep.subr.bf16.mxu0 0
          %570 = vmatpush1.bf16.msra.mxu0 %v553
          %571 = vmatprep.subr.bf16.mxu0 0
          %572 = vmatpush1.bf16.msra.mxu0 %v554
          %573 = vmatprep.subr.bf16.mxu0 0
          %574 = vmatpush1.bf16.msra.mxu0 %v555
          %575 = vmatprep.subr.bf16.mxu0 0
          %576 = vmatpush1.bf16.msra.mxu0 %v556
          %577 = vmatprep.subr.bf16.mxu0 0
          %578 = vmatpush1.bf16.msra.mxu0 %v557
          %579 = vmatprep.subr.bf16.mxu0 0
          %580 = vmatpush1.bf16.msra.mxu0 %v558
          %581 = vmatprep.subr.bf16.mxu0 0
          %582 = vmatpush1.bf16.msra.mxu0 %v559
          %583 = vmatprep.subr.bf16.mxu0 0
          %584 = vmatpush1.bf16.msra.mxu0 %v560
          %585 = vmatprep.subr.bf16.mxu0 0
          %586 = vmatpush1.bf16.msra.mxu0 0
          %587 = vmatprep.subr.bf16.mxu0 0
          %588 = vmatpush1.bf16.msra.mxu0 0
          %589 = vmatprep.subr.bf16.mxu0 0
          %590 = vmatpush1.bf16.msra.mxu0 0
          %591 = vmatprep.subr.bf16.mxu0 0
          %592 = vmatpush1.bf16.msra.mxu0 0
          %593 = vmatprep.subr.bf16.mxu0 0
          %594 = vmatpush1.bf16.msra.mxu0 0
          %595 = vmatprep.subr.bf16.mxu0 0
          %596 = vmatpush1.bf16.msra.mxu0 0
          %597 = vmatprep.subr.bf16.mxu0 0
          %598 = vmatpush1.bf16.msra.mxu0 0
          %599 = vmatprep.subr.bf16.mxu0 0
          %600 = vmatpush1.bf16.msra.mxu0 0
          %601 = vmatprep.mubr.bf16.mxu0 0
          %602 = vmatmul.mubr.bf16.gmra.mrb[0].mxu0 %v477
          %v603 = vpop.f32.mrb[0].mxu0
          %v604 = vadd.f32 0.0, %v603
          %v605 = vpop.f32.mrb[0].mxu0
          %v606 = vpop.f32.mrb[0].mxu0
          %v607 = vadd.f32 0.0, %v606
          %v608 = vpop.f32.mrb[0].mxu0
          %609 = vmatprep.mubr.bf16.mxu0 0
          %610 = vmatmul.mubr.bf16.gmra.mrb[0].mxu0 %v478
          %v611 = vpop.f32.mrb[0].mxu0
          %v612 = vadd.f32 0.0, %v611
          %v613 = vpop.f32.mrb[0].mxu0
          %v614 = vpop.f32.mrb[0].mxu0
          %v615 = vadd.f32 0.0, %v614
          %v616 = vpop.f32.mrb[0].mxu0
          %617 = vmatprep.mubr.bf16.mxu0 0
          %618 = vmatmul.mubr.bf16.gmra.mrb[0].mxu0 %v479
          %v619 = vpop.f32.mrb[0].mxu0
          %v620 = vadd.f32 0.0, %v619
          %v621 = vpop.f32.mrb[0].mxu0
          %v622 = vpop.f32.mrb[0].mxu0
          %v623 = vadd.f32 0.0, %v622
          %v624 = vpop.f32.mrb[0].mxu0
          %625 = vmatprep.mubr.bf16.mxu0 0
          %626 = vmatmul.mubr.bf16.gmra.mrb[0].mxu0 %v480
          %v627 = vpop.f32.mrb[0].mxu0
          %v628 = vadd.f32 0.0, %v627
          %v629 = vpop.f32.mrb[0].mxu0
          %v630 = vpop.f32.mrb[0].mxu0
          %v631 = vadd.f32 0.0, %v630
          %v632 = vpop.f32.mrb[0].mxu0
          %633 = vmatprep.mubr.bf16.mxu0 0
          %634 = vmatmul.mubr.bf16.gmra.mrb[0].mxu0 %v481
          %v635 = vpop.f32.mrb[0].mxu0
          %v636 = vadd.f32 0.0, %v635
          %v637 = vpop.f32.mrb[0].mxu0
          %v638 = vpop.f32.mrb[0].mxu0
          %v639 = vadd.f32 0.0, %v638
          %v640 = vpop.f32.mrb[0].mxu0
          %641 = vmatprep.mubr.bf16.mxu0 0
          %642 = vmatmul.mubr.bf16.gmra.mrb[0].mxu0 %v482
          %v643 = vpop.f32.mrb[0].mxu0
          %v644 = vadd.f32 0.0, %v643
          %v645 = vpop.f32.mrb[0].mxu0
          %v646 = vpop.f32.mrb[0].mxu0
          %v647 = vadd.f32 0.0, %v646
          %v648 = vpop.f32.mrb[0].mxu0
          %649 = vmatprep.mubr.bf16.mxu0 0
          %650 = vmatmul.mubr.bf16.gmra.mrb[0].mxu0 %v483
          %v651 = vpop.f32.mrb[0].mxu0
          %v652 = vadd.f32 0.0, %v651
          %v653 = vpop.f32.mrb[0].mxu0
          %v654 = vpop.f32.mrb[0].mxu0
          %v655 = vadd.f32 0.0, %v654
          %v656 = vpop.f32.mrb[0].mxu0
          %657 = vmatprep.mubr.bf16.mxu0 0
          %658 = vmatmul.mubr.bf16.gmra.mrb[0].mxu0 %v484
          %v659 = vpop.f32.mrb[0].mxu0
          %v660 = vadd.f32 0.0, %v659
          %v661 = vpop.f32.mrb[0].mxu0
          %v662 = vpop.f32.mrb[0].mxu0
          %v663 = vadd.f32 0.0, %v662
          %v664 = vpop.f32.mrb[0].mxu0
          %665 = vdwg.mxu0
          %667 = vset.pattern.permute.xlu0 0
          %668 = vperm.xlu0 %667, %v485
          %v669 = vpop.permute.xlu0 %668
          %672 = vset.pattern.permute.xlu0 0
          %673 = vperm.xlu0 %672, %v486
          %v674 = vpop.permute.xlu0 %673
          %677 = vset.pattern.permute.xlu0 0
          %678 = vperm.xlu0 %677, %v487
          %v679 = vpop.permute.xlu0 %678
          %682 = vset.pattern.permute.xlu0 0
          %683 = vperm.xlu0 %682, %v488
          %v684 = vpop.permute.xlu0 %683
          %687 = vset.pattern.permute.xlu0 0
          %688 = vperm.xlu0 %687, %v489
          %v689 = vpop.permute.xlu0 %688
          %692 = vset.pattern.permute.xlu0 0
          %693 = vperm.xlu0 %692, %v490
          %v694 = vpop.permute.xlu0 %693
          %697 = vset.pattern.permute.xlu0 0
          %698 = vperm.xlu0 %697, %v491
          %v699 = vpop.permute.xlu0 %698
          %702 = vset.pattern.permute.xlu0 0
          %703 = vperm.xlu0 %702, %v492
          %v704 = vpop.permute.xlu0 %703
          %707 = vset.pattern.permute.xlu0 0
          %708 = vperm.xlu0 %707, %v493
          %v709 = vpop.permute.xlu0 %708
          %712 = vset.pattern.permute.xlu0 0
          %713 = vperm.xlu0 %712, %v494
          %v714 = vpop.permute.xlu0 %713
          %717 = vset.pattern.permute.xlu0 0
          %718 = vperm.xlu0 %717, %v495
          %v719 = vpop.permute.xlu0 %718
          %722 = vset.pattern.permute.xlu0 0
          %723 = vperm.xlu0 %722, %v496
          %v724 = vpop.permute.xlu0 %723
          %727 = vset.pattern.permute.xlu0 0
          %728 = vperm.xlu0 %727, %v497
          %v729 = vpop.permute.xlu0 %728
          %732 = vset.pattern.permute.xlu0 0
          %733 = vperm.xlu0 %732, %v498
          %v734 = vpop.permute.xlu0 %733
          %737 = vset.pattern.permute.xlu0 0
          %738 = vperm.xlu0 %737, %v499
          %v739 = vpop.permute.xlu0 %738
          %742 = vset.pattern.permute.xlu0 0
          %743 = vperm.xlu0 %742, %v500
          %v744 = vpop.permute.xlu0 %743
          %v746 = vmul.f32 %v604, %v669
          %v747 = vmul.f32 %v607, %v674
          %v748 = vmul.f32 %v612, %v679
          %v749 = vmul.f32 %v615, %v684
          %v750 = vmul.f32 %v620, %v689
          %v751 = vmul.f32 %v623, %v694
          %v752 = vmul.f32 %v628, %v699
          %v753 = vmul.f32 %v631, %v704
          %v754 = vmul.f32 %v636, %v709
          %v755 = vmul.f32 %v639, %v714
          %v756 = vmul.f32 %v644, %v719
          %v757 = vmul.f32 %v647, %v724
          %v758 = vmul.f32 %v652, %v729
          %v759 = vmul.f32 %v655, %v734
          %v760 = vmul.f32 %v660, %v739
          %v761 = vmul.f32 %v663, %v744
          %s762 = sshra.s32 %s472, 3
          %s763 = sand.u32 %s472, 7
          %s764 = smul.addr %s762, 4
          %s765 = scalar_lea.vmem %s2, %s764
          %v766 = vld [vmem:[%s765] sm:$0xf]
          %v767 = vld [vmem:[%s765 + $0x4] sm:$0xf]
          %v768 = vld [vmem:[%s765 + $0x8] sm:$0xf]
          %v769 = vld [vmem:[%s765 + $0xc] sm:$0xf]
          %v770 = vld [vmem:[%s765 + $0x10] sm:$0xf]
          %v771 = vld [vmem:[%s765 + $0x14] sm:$0xf]
          %v772 = vld [vmem:[%s765 + $0x18] sm:$0xf]
          %v773 = vld [vmem:[%s765 + $0x1c] sm:$0xf]
          %v774 = vld [vmem:[%s765 + $0x20] sm:$0xf]
          %v775 = vld [vmem:[%s765 + $0x24] sm:$0xf]
          %v776 = vld [vmem:[%s765 + $0x28] sm:$0xf]
          %v777 = vld [vmem:[%s765 + $0x2c] sm:$0xf]
          %v778 = vld [vmem:[%s765 + $0x30] sm:$0xf]
          %v779 = vld [vmem:[%s765 + $0x34] sm:$0xf]
          %v780 = vld [vmem:[%s765 + $0x38] sm:$0xf]
          %v781 = vld [vmem:[%s765 + $0x3c] sm:$0xf]
          %v782 = vld [vmem:[%s3] sm:$0xf]
          %v783 = vld [vmem:[%s3 + $0x4] sm:$0xf]
          %v784 = vld [vmem:[%s3 + $0x8] sm:$0xf]
          %v785 = vld [vmem:[%s3 + $0xc] sm:$0xf]
          %v786 = vld [vmem:[%s3 + $0x10] sm:$0xf]
          %v787 = vld [vmem:[%s3 + $0x14] sm:$0xf]
          %v788 = vld [vmem:[%s3 + $0x18] sm:$0xf]
          %v789 = vld [vmem:[%s3 + $0x1c] sm:$0xf]
          %v790 = vld [vmem:[%s3 + $0x20] sm:$0xf]
          %v791 = vld [vmem:[%s3 + $0x24] sm:$0xf]
          %v792 = vld [vmem:[%s3 + $0x28] sm:$0xf]
          %v793 = vld [vmem:[%s3 + $0x2c] sm:$0xf]
          %v794 = vld [vmem:[%s3 + $0x30] sm:$0xf]
          %v795 = vld [vmem:[%s3 + $0x34] sm:$0xf]
          %v796 = vld [vmem:[%s3 + $0x38] sm:$0xf]
          %v797 = vld [vmem:[%s3 + $0x3c] sm:$0xf]
          %v798 = vpack.c.bf16 %v747, %v746
          %v799 = vpack.c.bf16 %v749, %v748
          %v800 = vpack.c.bf16 %v751, %v750
          %v801 = vpack.c.bf16 %v753, %v752
          %v802 = vpack.c.bf16 %v755, %v754
          %v803 = vpack.c.bf16 %v757, %v756
          %v804 = vpack.c.bf16 %v759, %v758
          %v805 = vpack.c.bf16 %v761, %v760
          %v806 = vld [vmem:[#allocation7] sm:$0xf]
          %v807 = vld [vmem:[#allocation7 + $0x4] sm:$0xf]
          %v808 = vld [vmem:[#allocation7 + $0x8] sm:$0xf]
          %v809 = vld [vmem:[#allocation7 + $0xc] sm:$0xf]
          %v810 = vld [vmem:[#allocation7 + $0x10] sm:$0xf]
          %v811 = vld [vmem:[#allocation7 + $0x14] sm:$0xf]
          %v812 = vld [vmem:[#allocation7 + $0x18] sm:$0xf]
          %v813 = vld [vmem:[#allocation7 + $0x1c] sm:$0xf]
          %v814 = vld [vmem:[#allocation7 + $0x20] sm:$0xf]
          %v815 = vld [vmem:[#allocation7 + $0x24] sm:$0xf]
          %v816 = vld [vmem:[#allocation7 + $0x28] sm:$0xf]
          %v817 = vld [vmem:[#allocation7 + $0x2c] sm:$0xf]
          %v818 = vld [vmem:[#allocation7 + $0x30] sm:$0xf]
          %v819 = vld [vmem:[#allocation7 + $0x34] sm:$0xf]
          %v820 = vld [vmem:[#allocation7 + $0x38] sm:$0xf]
          %v821 = vld [vmem:[#allocation7 + $0x3c] sm:$0xf]
          %v838 = vunpack.c.l.b16 %v806
          %v839 = vunpack.c.l.b16 %v807
          %v840 = vunpack.c.l.b16 %v808
          %v841 = vunpack.c.l.b16 %v809
          %v842 = vunpack.c.l.b16 %v810
          %v843 = vunpack.c.l.b16 %v811
          %v844 = vunpack.c.l.b16 %v812
          %v845 = vunpack.c.l.b16 %v813
          %v846 = vunpack.c.l.b16 %v814
          %v847 = vunpack.c.l.b16 %v815
          %v848 = vunpack.c.l.b16 %v816
          %v849 = vunpack.c.l.b16 %v817
          %v850 = vunpack.c.l.b16 %v818
          %v851 = vunpack.c.l.b16 %v819
          %v852 = vunpack.c.l.b16 %v820
          %v853 = vunpack.c.l.b16 %v821
          %v854 = vpack.c.b16 %v839, %v838
          %v855 = vpack.c.b16 %v841, %v840
          %v856 = vpack.c.b16 %v843, %v842
          %v857 = vpack.c.b16 %v845, %v844
          %v858 = vpack.c.b16 %v847, %v846
          %v859 = vpack.c.b16 %v849, %v848
          %v860 = vpack.c.b16 %v851, %v850
          %v861 = vpack.c.b16 %v853, %v852
          %870 = vmatprep.subr.bf16.mxu0 0
          %871 = vmatpush1.bf16.msra.mxu0 %v854
          %872 = vmatprep.subr.bf16.mxu0 0
          %873 = vmatpush1.bf16.msra.mxu0 %v855
          %874 = vmatprep.subr.bf16.mxu0 0
          %875 = vmatpush1.bf16.msra.mxu0 %v856
          %876 = vmatprep.subr.bf16.mxu0 0
          %877 = vmatpush1.bf16.msra.mxu0 %v857
          %878 = vmatprep.subr.bf16.mxu0 0
          %879 = vmatpush1.bf16.msra.mxu0 %v858
          %880 = vmatprep.subr.bf16.mxu0 0
          %881 = vmatpush1.bf16.msra.mxu0 %v859
          %882 = vmatprep.subr.bf16.mxu0 0
          %883 = vmatpush1.bf16.msra.mxu0 %v860
          %884 = vmatprep.subr.bf16.mxu0 0
          %885 = vmatpush1.bf16.msra.mxu0 %v861
          %886 = vmatprep.subr.bf16.mxu0 0
          %887 = vmatpush1.bf16.msra.mxu0 0
          %888 = vmatprep.subr.bf16.mxu0 0
          %889 = vmatpush1.bf16.msra.mxu0 0
          %890 = vmatprep.subr.bf16.mxu0 0
          %891 = vmatpush1.bf16.msra.mxu0 0
          %892 = vmatprep.subr.bf16.mxu0 0
          %893 = vmatpush1.bf16.msra.mxu0 0
          %894 = vmatprep.subr.bf16.mxu0 0
          %895 = vmatpush1.bf16.msra.mxu0 0
          %896 = vmatprep.subr.bf16.mxu0 0
          %897 = vmatpush1.bf16.msra.mxu0 0
          %898 = vmatprep.subr.bf16.mxu0 0
          %899 = vmatpush1.bf16.msra.mxu0 0
          %900 = vmatprep.subr.bf16.mxu0 0
          %901 = vmatpush1.bf16.msra.mxu0 0
          %902 = vmatprep.mubr.bf16.mxu0 0
          %903 = vmatmul.mubr.bf16.gmra.mrb[0].mxu0 %v798
          %v904 = vpop.f32.mrb[0].mxu0
          %v905 = vadd.f32 0.0, %v904
          %v906 = vpop.f32.mrb[0].mxu0
          %v907 = vpop.f32.mrb[0].mxu0
          %v908 = vadd.f32 0.0, %v907
          %v909 = vpop.f32.mrb[0].mxu0
          %910 = vmatprep.mubr.bf16.mxu0 0
          %911 = vmatmul.mubr.bf16.gmra.mrb[0].mxu0 %v799
          %v912 = vpop.f32.mrb[0].mxu0
          %v913 = vadd.f32 0.0, %v912
          %v914 = vpop.f32.mrb[0].mxu0
          %v915 = vpop.f32.mrb[0].mxu0
          %v916 = vadd.f32 0.0, %v915
          %v917 = vpop.f32.mrb[0].mxu0
          %918 = vmatprep.mubr.bf16.mxu0 0
          %919 = vmatmul.mubr.bf16.gmra.mrb[0].mxu0 %v800
          %v920 = vpop.f32.mrb[0].mxu0
          %v921 = vadd.f32 0.0, %v920
          %v922 = vpop.f32.mrb[0].mxu0
          %v923 = vpop.f32.mrb[0].mxu0
          %v924 = vadd.f32 0.0, %v923
          %v925 = vpop.f32.mrb[0].mxu0
          %926 = vmatprep.mubr.bf16.mxu0 0
          %927 = vmatmul.mubr.bf16.gmra.mrb[0].mxu0 %v801
          %v928 = vpop.f32.mrb[0].mxu0
          %v929 = vadd.f32 0.0, %v928
          %v930 = vpop.f32.mrb[0].mxu0
          %v931 = vpop.f32.mrb[0].mxu0
          %v932 = vadd.f32 0.0, %v931
          %v933 = vpop.f32.mrb[0].mxu0
          %934 = vmatprep.mubr.bf16.mxu0 0
          %935 = vmatmul.mubr.bf16.gmra.mrb[0].mxu0 %v802
          %v936 = vpop.f32.mrb[0].mxu0
          %v937 = vadd.f32 0.0, %v936
          %v938 = vpop.f32.mrb[0].mxu0
          %v939 = vpop.f32.mrb[0].mxu0
          %v940 = vadd.f32 0.0, %v939
          %v941 = vpop.f32.mrb[0].mxu0
          %942 = vmatprep.mubr.bf16.mxu0 0
          %943 = vmatmul.mubr.bf16.gmra.mrb[0].mxu0 %v803
          %v944 = vpop.f32.mrb[0].mxu0
          %v945 = vadd.f32 0.0, %v944
          %v946 = vpop.f32.mrb[0].mxu0
          %v947 = vpop.f32.mrb[0].mxu0
          %v948 = vadd.f32 0.0, %v947
          %v949 = vpop.f32.mrb[0].mxu0
          %950 = vmatprep.mubr.bf16.mxu0 0
          %951 = vmatmul.mubr.bf16.gmra.mrb[0].mxu0 %v804
          %v952 = vpop.f32.mrb[0].mxu0
          %v953 = vadd.f32 0.0, %v952
          %v954 = vpop.f32.mrb[0].mxu0
          %v955 = vpop.f32.mrb[0].mxu0
          %v956 = vadd.f32 0.0, %v955
          %v957 = vpop.f32.mrb[0].mxu0
          %958 = vmatprep.mubr.bf16.mxu0 0
          %959 = vmatmul.mubr.bf16.gmra.mrb[0].mxu0 %v805
          %v960 = vpop.f32.mrb[0].mxu0
          %v961 = vadd.f32 0.0, %v960
          %v962 = vpop.f32.mrb[0].mxu0
          %v963 = vpop.f32.mrb[0].mxu0
          %v964 = vadd.f32 0.0, %v963
          %v965 = vpop.f32.mrb[0].mxu0
          %966 = vdwg.mxu0
          %v983 = vunpack.c.l.b16 %v766
          %v984 = vunpack.c.l.b16 %v767
          %v985 = vunpack.c.l.b16 %v768
          %v986 = vunpack.c.l.b16 %v769
          %v987 = vunpack.c.l.b16 %v770
          %v988 = vunpack.c.l.b16 %v771
          %v989 = vunpack.c.l.b16 %v772
          %v990 = vunpack.c.l.b16 %v773
          %v991 = vunpack.c.l.b16 %v774
          %v992 = vunpack.c.l.b16 %v775
          %v993 = vunpack.c.l.b16 %v776
          %v994 = vunpack.c.l.b16 %v777
          %v995 = vunpack.c.l.b16 %v778
          %v996 = vunpack.c.l.b16 %v779
          %v997 = vunpack.c.l.b16 %v780
          %v998 = vunpack.c.l.b16 %v781
          %v999 = vpack.c.b16 %v984, %v983
          %v1000 = vpack.c.b16 %v986, %v985
          %v1001 = vpack.c.b16 %v988, %v987
          %v1002 = vpack.c.b16 %v990, %v989
          %v1003 = vpack.c.b16 %v992, %v991
          %v1004 = vpack.c.b16 %v994, %v993
          %v1005 = vpack.c.b16 %v996, %v995
          %v1006 = vpack.c.b16 %v998, %v997
          %v1031 = vunpack.c.l.b16 %v782
          %v1032 = vunpack.c.l.b16 %v783
          %v1033 = vunpack.c.l.b16 %v784
          %v1034 = vunpack.c.l.b16 %v785
          %v1035 = vunpack.c.l.b16 %v786
          %v1036 = vunpack.c.l.b16 %v787
          %v1037 = vunpack.c.l.b16 %v788
          %v1038 = vunpack.c.l.b16 %v789
          %v1039 = vunpack.c.l.b16 %v790
          %v1040 = vunpack.c.l.b16 %v791
          %v1041 = vunpack.c.l.b16 %v792
          %v1042 = vunpack.c.l.b16 %v793
          %v1043 = vunpack.c.l.b16 %v794
          %v1044 = vunpack.c.l.b16 %v795
          %v1045 = vunpack.c.l.b16 %v796
          %v1046 = vunpack.c.l.b16 %v797
          %v1047 = vpack.c.b16 %v1032, %v1031
          %v1048 = vpack.c.b16 %v1034, %v1033
          %v1049 = vpack.c.b16 %v1036, %v1035
          %v1050 = vpack.c.b16 %v1038, %v1037
          %v1051 = vpack.c.b16 %v1040, %v1039
          %v1052 = vpack.c.b16 %v1042, %v1041
          %v1053 = vpack.c.b16 %v1044, %v1043
          %v1054 = vpack.c.b16 %v1046, %v1045
          %1063 = vmatprep.subr.bf16.mxu0 0
          %1064 = vmatpush1.bf16.msra.mxu0 %v1047
          %1065 = vmatprep.subr.bf16.mxu0 0
          %1066 = vmatpush1.bf16.msra.mxu0 %v1048
          %1067 = vmatprep.subr.bf16.mxu0 0
          %1068 = vmatpush1.bf16.msra.mxu0 %v1049
          %1069 = vmatprep.subr.bf16.mxu0 0
          %1070 = vmatpush1.bf16.msra.mxu0 %v1050
          %1071 = vmatprep.subr.bf16.mxu0 0
          %1072 = vmatpush1.bf16.msra.mxu0 %v1051
          %1073 = vmatprep.subr.bf16.mxu0 0
          %1074 = vmatpush1.bf16.msra.mxu0 %v1052
          %1075 = vmatprep.subr.bf16.mxu0 0
          %1076 = vmatpush1.bf16.msra.mxu0 %v1053
          %1077 = vmatprep.subr.bf16.mxu0 0
          %1078 = vmatpush1.bf16.msra.mxu0 %v1054
          %1079 = vmatprep.subr.bf16.mxu0 0
          %1080 = vmatpush1.bf16.msra.mxu0 0
          %1081 = vmatprep.subr.bf16.mxu0 0
          %1082 = vmatpush1.bf16.msra.mxu0 0
          %1083 = vmatprep.subr.bf16.mxu0 0
          %1084 = vmatpush1.bf16.msra.mxu0 0
          %1085 = vmatprep.subr.bf16.mxu0 0
          %1086 = vmatpush1.bf16.msra.mxu0 0
          %1087 = vmatprep.subr.bf16.mxu0 0
          %1088 = vmatpush1.bf16.msra.mxu0 0
          %1089 = vmatprep.subr.bf16.mxu0 0
          %1090 = vmatpush1.bf16.msra.mxu0 0
          %1091 = vmatprep.subr.bf16.mxu0 0
          %1092 = vmatpush1.bf16.msra.mxu0 0
          %1093 = vmatprep.subr.bf16.mxu0 0
          %1094 = vmatpush1.bf16.msra.mxu0 0
          %1095 = vmatprep.mubr.bf16.mxu0 0
          %1096 = vmatmul.mubr.bf16.gmra.mrb[0].mxu0 %v999
          %v1097 = vpop.f32.mrb[0].mxu0
          %v1098 = vadd.f32 %v905, %v1097
          %v1099 = vpop.f32.mrb[0].mxu0
          %v1100 = vpop.f32.mrb[0].mxu0
          %v1101 = vadd.f32 %v908, %v1100
          %v1102 = vpop.f32.mrb[0].mxu0
          %1103 = vmatprep.mubr.bf16.mxu0 0
          %1104 = vmatmul.mubr.bf16.gmra.mrb[0].mxu0 %v1000
          %v1105 = vpop.f32.mrb[0].mxu0
          %v1106 = vadd.f32 %v913, %v1105
          %v1107 = vpop.f32.mrb[0].mxu0
          %v1108 = vpop.f32.mrb[0].mxu0
          %v1109 = vadd.f32 %v916, %v1108
          %v1110 = vpop.f32.mrb[0].mxu0
          %1111 = vmatprep.mubr.bf16.mxu0 0
          %1112 = vmatmul.mubr.bf16.gmra.mrb[0].mxu0 %v1001
          %v1113 = vpop.f32.mrb[0].mxu0
          %v1114 = vadd.f32 %v921, %v1113
          %v1115 = vpop.f32.mrb[0].mxu0
          %v1116 = vpop.f32.mrb[0].mxu0
          %v1117 = vadd.f32 %v924, %v1116
          %v1118 = vpop.f32.mrb[0].mxu0
          %1119 = vmatprep.mubr.bf16.mxu0 0
          %1120 = vmatmul.mubr.bf16.gmra.mrb[0].mxu0 %v1002
          %v1121 = vpop.f32.mrb[0].mxu0
          %v1122 = vadd.f32 %v929, %v1121
          %v1123 = vpop.f32.mrb[0].mxu0
          %v1124 = vpop.f32.mrb[0].mxu0
          %v1125 = vadd.f32 %v932, %v1124
          %v1126 = vpop.f32.mrb[0].mxu0
          %1127 = vmatprep.mubr.bf16.mxu0 0
          %1128 = vmatmul.mubr.bf16.gmra.mrb[0].mxu0 %v1003
          %v1129 = vpop.f32.mrb[0].mxu0
          %v1130 = vadd.f32 %v937, %v1129
          %v1131 = vpop.f32.mrb[0].mxu0
          %v1132 = vpop.f32.mrb[0].mxu0
          %v1133 = vadd.f32 %v940, %v1132
          %v1134 = vpop.f32.mrb[0].mxu0
          %1135 = vmatprep.mubr.bf16.mxu0 0
          %1136 = vmatmul.mubr.bf16.gmra.mrb[0].mxu0 %v1004
          %v1137 = vpop.f32.mrb[0].mxu0
          %v1138 = vadd.f32 %v945, %v1137
          %v1139 = vpop.f32.mrb[0].mxu0
          %v1140 = vpop.f32.mrb[0].mxu0
          %v1141 = vadd.f32 %v948, %v1140
          %v1142 = vpop.f32.mrb[0].mxu0
          %1143 = vmatprep.mubr.bf16.mxu0 0
          %1144 = vmatmul.mubr.bf16.gmra.mrb[0].mxu0 %v1005
          %v1145 = vpop.f32.mrb[0].mxu0
          %v1146 = vadd.f32 %v953, %v1145
          %v1147 = vpop.f32.mrb[0].mxu0
          %v1148 = vpop.f32.mrb[0].mxu0
          %v1149 = vadd.f32 %v956, %v1148
          %v1150 = vpop.f32.mrb[0].mxu0
          %1151 = vmatprep.mubr.bf16.mxu0 0
          %1152 = vmatmul.mubr.bf16.gmra.mrb[0].mxu0 %v1006
          %v1153 = vpop.f32.mrb[0].mxu0
          %v1154 = vadd.f32 %v961, %v1153
          %v1155 = vpop.f32.mrb[0].mxu0
          %v1156 = vpop.f32.mrb[0].mxu0
          %v1157 = vadd.f32 %v964, %v1156
          %v1158 = vpop.f32.mrb[0].mxu0
          %1159 = vdwg.mxu0
          %v1160 = vld [vmem:[%s5] sm:$0x1]
          %v1162 = vlaneseq
          %v1163 = vshrl.u32 %v1162, 7
          %v1164 = vsub.s32 0, %v1163
          %v1165 = vrot.slane %v1160, %v1164
          %v1167 = vadd.f32 %v1098, %v1165
          %v1168 = vadd.f32 %v1101, %v1165
          %v1169 = vadd.f32 %v1106, %v1165
          %v1170 = vadd.f32 %v1109, %v1165
          %v1171 = vadd.f32 %v1114, %v1165
          %v1172 = vadd.f32 %v1117, %v1165
          %v1173 = vadd.f32 %v1122, %v1165
          %v1174 = vadd.f32 %v1125, %v1165
          %v1175 = vadd.f32 %v1130, %v1165
          %v1176 = vadd.f32 %v1133, %v1165
          %v1177 = vadd.f32 %v1138, %v1165
          %v1178 = vadd.f32 %v1141, %v1165
          %v1179 = vadd.f32 %v1146, %v1165
          %v1180 = vadd.f32 %v1149, %v1165
          %v1181 = vadd.f32 %v1154, %v1165
          %v1182 = vadd.f32 %v1157, %v1165
          %v1183 = vmax.f32 %v1167, 0.0
          %v1184 = vmax.f32 %v1168, 0.0
          %v1185 = vmax.f32 %v1169, 0.0
          %v1186 = vmax.f32 %v1170, 0.0
          %v1187 = vmax.f32 %v1171, 0.0
          %v1188 = vmax.f32 %v1172, 0.0
          %v1189 = vmax.f32 %v1173, 0.0
          %v1190 = vmax.f32 %v1174, 0.0
          %v1191 = vmax.f32 %v1175, 0.0
          %v1192 = vmax.f32 %v1176, 0.0
          %v1193 = vmax.f32 %v1177, 0.0
          %v1194 = vmax.f32 %v1178, 0.0
          %v1195 = vmax.f32 %v1179, 0.0
          %v1196 = vmax.f32 %v1180, 0.0
          %v1197 = vmax.f32 %v1181, 0.0
          %v1198 = vmax.f32 %v1182, 0.0
          %1199 = vadd.xlane.f32.xlu0 %v1183
          %v1200 = vpop.xlane.xlu0 %1199
          %1201 = vadd.xlane.f32.xlu0 %v1184
          %v1202 = vpop.xlane.xlu0 %1201
          %1203 = vadd.xlane.f32.xlu0 %v1185
          %v1204 = vpop.xlane.xlu0 %1203
          %1205 = vadd.xlane.f32.xlu0 %v1186
          %v1206 = vpop.xlane.xlu0 %1205
          %1207 = vadd.xlane.f32.xlu0 %v1187
          %v1208 = vpop.xlane.xlu0 %1207
          %1209 = vadd.xlane.f32.xlu0 %v1188
          %v1210 = vpop.xlane.xlu0 %1209
          %1211 = vadd.xlane.f32.xlu0 %v1189
          %v1212 = vpop.xlane.xlu0 %1211
          %1213 = vadd.xlane.f32.xlu0 %v1190
          %v1214 = vpop.xlane.xlu0 %1213
          %1215 = vadd.xlane.f32.xlu0 %v1191
          %v1216 = vpop.xlane.xlu0 %1215
          %1217 = vadd.xlane.f32.xlu0 %v1192
          %v1218 = vpop.xlane.xlu0 %1217
          %1219 = vadd.xlane.f32.xlu0 %v1193
          %v1220 = vpop.xlane.xlu0 %1219
          %1221 = vadd.xlane.f32.xlu0 %v1194
          %v1222 = vpop.xlane.xlu0 %1221
          %1223 = vadd.xlane.f32.xlu0 %v1195
          %v1224 = vpop.xlane.xlu0 %1223
          %1225 = vadd.xlane.f32.xlu0 %v1196
          %v1226 = vpop.xlane.xlu0 %1225
          %1227 = vadd.xlane.f32.xlu0 %v1197
          %v1228 = vpop.xlane.xlu0 %1227
          %1229 = vadd.xlane.f32.xlu0 %v1198
          %v1230 = vpop.xlane.xlu0 %1229
          %v1231 = vmul.f32 %v1183, %v1183
          %v1232 = vmul.f32 %v1184, %v1184
          %v1233 = vmul.f32 %v1185, %v1185
          %v1234 = vmul.f32 %v1186, %v1186
          %v1235 = vmul.f32 %v1187, %v1187
          %v1236 = vmul.f32 %v1188, %v1188
          %v1237 = vmul.f32 %v1189, %v1189
          %v1238 = vmul.f32 %v1190, %v1190
          %v1239 = vmul.f32 %v1191, %v1191
          %v1240 = vmul.f32 %v1192, %v1192
          %v1241 = vmul.f32 %v1193, %v1193
          %v1242 = vmul.f32 %v1194, %v1194
          %v1243 = vmul.f32 %v1195, %v1195
          %v1244 = vmul.f32 %v1196, %v1196
          %v1245 = vmul.f32 %v1197, %v1197
          %v1246 = vmul.f32 %v1198, %v1198
          %1247 = vadd.xlane.f32.xlu0 %v1231
          %v1248 = vpop.xlane.xlu0 %1247
          %1249 = vadd.xlane.f32.xlu0 %v1232
          %v1250 = vpop.xlane.xlu0 %1249
          %1251 = vadd.xlane.f32.xlu0 %v1233
          %v1252 = vpop.xlane.xlu0 %1251
          %1253 = vadd.xlane.f32.xlu0 %v1234
          %v1254 = vpop.xlane.xlu0 %1253
          %1255 = vadd.xlane.f32.xlu0 %v1235
          %v1256 = vpop.xlane.xlu0 %1255
          %1257 = vadd.xlane.f32.xlu0 %v1236
          %v1258 = vpop.xlane.xlu0 %1257
          %1259 = vadd.xlane.f32.xlu0 %v1237
          %v1260 = vpop.xlane.xlu0 %1259
          %1261 = vadd.xlane.f32.xlu0 %v1238
          %v1262 = vpop.xlane.xlu0 %1261
          %1263 = vadd.xlane.f32.xlu0 %v1239
          %v1264 = vpop.xlane.xlu0 %1263
          %1265 = vadd.xlane.f32.xlu0 %v1240
          %v1266 = vpop.xlane.xlu0 %1265
          %1267 = vadd.xlane.f32.xlu0 %v1241
          %v1268 = vpop.xlane.xlu0 %1267
          %1269 = vadd.xlane.f32.xlu0 %v1242
          %v1270 = vpop.xlane.xlu0 %1269
          %1271 = vadd.xlane.f32.xlu0 %v1243
          %v1272 = vpop.xlane.xlu0 %1271
          %1273 = vadd.xlane.f32.xlu0 %v1244
          %v1274 = vpop.xlane.xlu0 %1273
          %1275 = vadd.xlane.f32.xlu0 %v1245
          %v1276 = vpop.xlane.xlu0 %1275
          %1277 = vadd.xlane.f32.xlu0 %v1246
          %v1278 = vpop.xlane.xlu0 %1277
          %v1279 = vmul.f32 %v1200, 0.03125
          %v1280 = vmul.f32 %v1202, 0.03125
          %v1281 = vmul.f32 %v1204, 0.03125
          %v1282 = vmul.f32 %v1206, 0.03125
          %v1283 = vmul.f32 %v1208, 0.03125
          %v1284 = vmul.f32 %v1210, 0.03125
          %v1285 = vmul.f32 %v1212, 0.03125
          %v1286 = vmul.f32 %v1214, 0.03125
          %v1287 = vmul.f32 %v1216, 0.03125
          %v1288 = vmul.f32 %v1218, 0.03125
          %v1289 = vmul.f32 %v1220, 0.03125
          %v1290 = vmul.f32 %v1222, 0.03125
          %v1291 = vmul.f32 %v1224, 0.03125
          %v1292 = vmul.f32 %v1226, 0.03125
          %v1293 = vmul.f32 %v1228, 0.03125
          %v1294 = vmul.f32 %v1230, 0.03125
          %v1295 = vmul.f32 %v1248, 0.03125
          %v1296 = vmul.f32 %v1250, 0.03125
          %v1297 = vmul.f32 %v1252, 0.03125
          %v1298 = vmul.f32 %v1254, 0.03125
          %v1299 = vmul.f32 %v1256, 0.03125
          %v1300 = vmul.f32 %v1258, 0.03125
          %v1301 = vmul.f32 %v1260, 0.03125
          %v1302 = vmul.f32 %v1262, 0.03125
          %v1303 = vmul.f32 %v1264, 0.03125
          %v1304 = vmul.f32 %v1266, 0.03125
          %v1305 = vmul.f32 %v1268, 0.03125
          %v1306 = vmul.f32 %v1270, 0.03125
          %v1307 = vmul.f32 %v1272, 0.03125
          %v1308 = vmul.f32 %v1274, 0.03125
          %v1309 = vmul.f32 %v1276, 0.03125
          %v1310 = vmul.f32 %v1278, 0.03125
          %v1311 = vmul.f32 %v1279, %v1279
          %v1312 = vmul.f32 %v1280, %v1280
          %v1313 = vmul.f32 %v1281, %v1281
          %v1314 = vmul.f32 %v1282, %v1282
          %v1315 = vmul.f32 %v1283, %v1283
          %v1316 = vmul.f32 %v1284, %v1284
          %v1317 = vmul.f32 %v1285, %v1285
          %v1318 = vmul.f32 %v1286, %v1286
          %v1319 = vmul.f32 %v1287, %v1287
          %v1320 = vmul.f32 %v1288, %v1288
          %v1321 = vmul.f32 %v1289, %v1289
          %v1322 = vmul.f32 %v1290, %v1290
          %v1323 = vmul.f32 %v1291, %v1291
          %v1324 = vmul.f32 %v1292, %v1292
          %v1325 = vmul.f32 %v1293, %v1293
          %v1326 = vmul.f32 %v1294, %v1294
          %v1327 = vsub.f32 %v1295, %v1311
          %v1328 = vsub.f32 %v1296, %v1312
          %v1329 = vsub.f32 %v1297, %v1313
          %v1330 = vsub.f32 %v1298, %v1314
          %v1331 = vsub.f32 %v1299, %v1315
          %v1332 = vsub.f32 %v1300, %v1316
          %v1333 = vsub.f32 %v1301, %v1317
          %v1334 = vsub.f32 %v1302, %v1318
          %v1335 = vsub.f32 %v1303, %v1319
          %v1336 = vsub.f32 %v1304, %v1320
          %v1337 = vsub.f32 %v1305, %v1321
          %v1338 = vsub.f32 %v1306, %v1322
          %v1339 = vsub.f32 %v1307, %v1323
          %v1340 = vsub.f32 %v1308, %v1324
          %v1341 = vsub.f32 %v1309, %v1325
          %v1342 = vsub.f32 %v1310, %v1326
          %v1343 = vmax.f32 %v1327, 0.0
          %v1344 = vmax.f32 %v1328, 0.0
          %v1345 = vmax.f32 %v1329, 0.0
          %v1346 = vmax.f32 %v1330, 0.0
          %v1347 = vmax.f32 %v1331, 0.0
          %v1348 = vmax.f32 %v1332, 0.0
          %v1349 = vmax.f32 %v1333, 0.0
          %v1350 = vmax.f32 %v1334, 0.0
          %v1351 = vmax.f32 %v1335, 0.0
          %v1352 = vmax.f32 %v1336, 0.0
          %v1353 = vmax.f32 %v1337, 0.0
          %v1354 = vmax.f32 %v1338, 0.0
          %v1355 = vmax.f32 %v1339, 0.0
          %v1356 = vmax.f32 %v1340, 0.0
          %v1357 = vmax.f32 %v1341, 0.0
          %v1358 = vmax.f32 %v1342, 0.0
          %v1359 = vsub.f32 %v1183, %v1279
          %v1360 = vsub.f32 %v1184, %v1280
          %v1361 = vsub.f32 %v1185, %v1281
          %v1362 = vsub.f32 %v1186, %v1282
          %v1363 = vsub.f32 %v1187, %v1283
          %v1364 = vsub.f32 %v1188, %v1284
          %v1365 = vsub.f32 %v1189, %v1285
          %v1366 = vsub.f32 %v1190, %v1286
          %v1367 = vsub.f32 %v1191, %v1287
          %v1368 = vsub.f32 %v1192, %v1288
          %v1369 = vsub.f32 %v1193, %v1289
          %v1370 = vsub.f32 %v1194, %v1290
          %v1371 = vsub.f32 %v1195, %v1291
          %v1372 = vsub.f32 %v1196, %v1292
          %v1373 = vsub.f32 %v1197, %v1293
          %v1374 = vsub.f32 %v1198, %v1294
          %v1375 = vadd.f32 %v1343, 1e-05
          %v1376 = vadd.f32 %v1344, 1e-05
          %v1377 = vadd.f32 %v1345, 1e-05
          %v1378 = vadd.f32 %v1346, 1e-05
          %v1379 = vadd.f32 %v1347, 1e-05
          %v1380 = vadd.f32 %v1348, 1e-05
          %v1381 = vadd.f32 %v1349, 1e-05
          %v1382 = vadd.f32 %v1350, 1e-05
          %v1383 = vadd.f32 %v1351, 1e-05
          %v1384 = vadd.f32 %v1352, 1e-05
          %v1385 = vadd.f32 %v1353, 1e-05
          %v1386 = vadd.f32 %v1354, 1e-05
          %v1387 = vadd.f32 %v1355, 1e-05
          %v1388 = vadd.f32 %v1356, 1e-05
          %v1389 = vadd.f32 %v1357, 1e-05
          %v1390 = vadd.f32 %v1358, 1e-05
          %v1391 = vrsqrt.pop %v1375
          %v1392 = vrsqrt.pop %v1376
          %v1393 = vrsqrt.pop %v1377
          %v1394 = vrsqrt.pop %v1378
          %v1395 = vrsqrt.pop %v1379
          %v1396 = vrsqrt.pop %v1380
          %v1397 = vrsqrt.pop %v1381
          %v1398 = vrsqrt.pop %v1382
          %v1399 = vrsqrt.pop %v1383
          %v1400 = vrsqrt.pop %v1384
          %v1401 = vrsqrt.pop %v1385
          %v1402 = vrsqrt.pop %v1386
          %v1403 = vrsqrt.pop %v1387
          %v1404 = vrsqrt.pop %v1388
          %v1405 = vrsqrt.pop %v1389
          %v1406 = vrsqrt.pop %v1390
          %v1407 = vmul.f32 %v1359, %v1391
          %v1408 = vmul.f32 %v1360, %v1392
          %v1409 = vmul.f32 %v1361, %v1393
          %v1410 = vmul.f32 %v1362, %v1394
          %v1411 = vmul.f32 %v1363, %v1395
          %v1412 = vmul.f32 %v1364, %v1396
          %v1413 = vmul.f32 %v1365, %v1397
          %v1414 = vmul.f32 %v1366, %v1398
          %v1415 = vmul.f32 %v1367, %v1399
          %v1416 = vmul.f32 %v1368, %v1400
          %v1417 = vmul.f32 %v1369, %v1401
          %v1418 = vmul.f32 %v1370, %v1402
          %v1419 = vmul.f32 %v1371, %v1403
          %v1420 = vmul.f32 %v1372, %v1404
          %v1421 = vmul.f32 %v1373, %v1405
          %v1422 = vmul.f32 %v1374, %v1406
          %v1423 = vld [vmem:[%s6] sm:$0x1]
          %v1425 = vlaneseq
          %v1426 = vshrl.u32 %v1425, 7
          %v1427 = vsub.s32 0, %v1426
          %v1428 = vrot.slane %v1423, %v1427
          %v1430 = vmul.f32 %v1407, %v1428
          %v1431 = vmul.f32 %v1408, %v1428
          %v1432 = vmul.f32 %v1409, %v1428
          %v1433 = vmul.f32 %v1410, %v1428
          %v1434 = vmul.f32 %v1411, %v1428
          %v1435 = vmul.f32 %v1412, %v1428
          %v1436 = vmul.f32 %v1413, %v1428
          %v1437 = vmul.f32 %v1414, %v1428
          %v1438 = vmul.f32 %v1415, %v1428
          %v1439 = vmul.f32 %v1416, %v1428
          %v1440 = vmul.f32 %v1417, %v1428
          %v1441 = vmul.f32 %v1418, %v1428
          %v1442 = vmul.f32 %v1419, %v1428
          %v1443 = vmul.f32 %v1420, %v1428
          %v1444 = vmul.f32 %v1421, %v1428
          %v1445 = vmul.f32 %v1422, %v1428
          %v1446 = vld [vmem:[%s7] sm:$0x1]
          %v1448 = vlaneseq
          %v1449 = vshrl.u32 %v1448, 7
          %v1450 = vsub.s32 0, %v1449
          %v1451 = vrot.slane %v1446, %v1450
          %v1453 = vadd.f32 %v1430, %v1451
          %v1454 = vadd.f32 %v1431, %v1451
          %v1455 = vadd.f32 %v1432, %v1451
          %v1456 = vadd.f32 %v1433, %v1451
          %v1457 = vadd.f32 %v1434, %v1451
          %v1458 = vadd.f32 %v1435, %v1451
          %v1459 = vadd.f32 %v1436, %v1451
          %v1460 = vadd.f32 %v1437, %v1451
          %v1461 = vadd.f32 %v1438, %v1451
          %v1462 = vadd.f32 %v1439, %v1451
          %v1463 = vadd.f32 %v1440, %v1451
          %v1464 = vadd.f32 %v1441, %v1451
          %v1465 = vadd.f32 %v1442, %v1451
          %v1466 = vadd.f32 %v1443, %v1451
          %v1467 = vadd.f32 %v1444, %v1451
          %v1468 = vadd.f32 %v1445, %v1451
          %v1469 = vpack.c.bf16 %v1454, %v1453
          %v1470 = vpack.c.bf16 %v1456, %v1455
          %v1471 = vpack.c.bf16 %v1458, %v1457
          %v1472 = vpack.c.bf16 %v1460, %v1459
          %v1473 = vpack.c.bf16 %v1462, %v1461
          %v1474 = vpack.c.bf16 %v1464, %v1463
          %v1475 = vpack.c.bf16 %v1466, %v1465
          %v1476 = vpack.c.bf16 %v1468, %v1467
          %s1477 = sshra.s32 %s472, 4
          %s1478 = sand.u32 %s472, 15
          %s1479 = smul.addr %s1477, 8
          %s1480 = scalar_lea.vmem [#allocation2], %s1479
          %1481 = vst [vmem:[%s1480] sm:$0xff] %v1469
          %1482 = vst [vmem:[%s1480 + $0x8] sm:$0xff] %v1470
          %1483 = vst [vmem:[%s1480 + $0x10] sm:$0xff] %v1471
          %1484 = vst [vmem:[%s1480 + $0x18] sm:$0xff] %v1472
          %1485 = vst [vmem:[%s1480 + $0x20] sm:$0xff] %v1473
          %1486 = vst [vmem:[%s1480 + $0x28] sm:$0xff] %v1474
          %1487 = vst [vmem:[%s1480 + $0x30] sm:$0xff] %v1475
          %1488 = vst [vmem:[%s1480 + $0x38] sm:$0xff] %v1476
          %v1489 = vld [vmem:[#allocation10] sm:$0xf]
          %v1490 = vld [vmem:[#allocation10 + $0x4] sm:$0xf]
          %v1491 = vld [vmem:[#allocation10 + $0x8] sm:$0xf]
          %v1492 = vld [vmem:[#allocation10 + $0xc] sm:$0xf]
          %v1493 = vld [vmem:[#allocation10 + $0x10] sm:$0xf]
          %v1494 = vld [vmem:[#allocation10 + $0x14] sm:$0xf]
          %v1495 = vld [vmem:[#allocation10 + $0x18] sm:$0xf]
          %v1496 = vld [vmem:[#allocation10 + $0x1c] sm:$0xf]
          %v1497 = vld [vmem:[#allocation10 + $0x20] sm:$0xf]
          %v1498 = vld [vmem:[#allocation10 + $0x24] sm:$0xf]
          %v1499 = vld [vmem:[#allocation10 + $0x28] sm:$0xf]
          %v1500 = vld [vmem:[#allocation10 + $0x2c] sm:$0xf]
          %v1501 = vld [vmem:[#allocation10 + $0x30] sm:$0xf]
          %v1502 = vld [vmem:[#allocation10 + $0x34] sm:$0xf]
          %v1503 = vld [vmem:[#allocation10 + $0x38] sm:$0xf]
          %v1504 = vld [vmem:[#allocation10 + $0x3c] sm:$0xf]
          %v1521 = vunpack.c.l.b16 %v1489
          %v1522 = vunpack.c.l.b16 %v1490
          %v1523 = vunpack.c.l.b16 %v1491
          %v1524 = vunpack.c.l.b16 %v1492
          %v1525 = vunpack.c.l.b16 %v1493
          %v1526 = vunpack.c.l.b16 %v1494
          %v1527 = vunpack.c.l.b16 %v1495
          %v1528 = vunpack.c.l.b16 %v1496
          %v1529 = vunpack.c.l.b16 %v1497
          %v1530 = vunpack.c.l.b16 %v1498
          %v1531 = vunpack.c.l.b16 %v1499
          %v1532 = vunpack.c.l.b16 %v1500
          %v1533 = vunpack.c.l.b16 %v1501
          %v1534 = vunpack.c.l.b16 %v1502
          %v1535 = vunpack.c.l.b16 %v1503
          %v1536 = vunpack.c.l.b16 %v1504
          %v1537 = vpack.c.b16 %v1522, %v1521
          %v1538 = vpack.c.b16 %v1524, %v1523
          %v1539 = vpack.c.b16 %v1526, %v1525
          %v1540 = vpack.c.b16 %v1528, %v1527
          %v1541 = vpack.c.b16 %v1530, %v1529
          %v1542 = vpack.c.b16 %v1532, %v1531
          %v1543 = vpack.c.b16 %v1534, %v1533
          %v1544 = vpack.c.b16 %v1536, %v1535
          %1553 = vmatprep.subr.bf16.mxu0 0
          %1554 = vmatpush1.bf16.msra.mxu0 %v1537
          %1555 = vmatprep.subr.bf16.mxu0 0
          %1556 = vmatpush1.bf16.msra.mxu0 %v1538
          %1557 = vmatprep.subr.bf16.mxu0 0
          %1558 = vmatpush1.bf16.msra.mxu0 %v1539
          %1559 = vmatprep.subr.bf16.mxu0 0
          %1560 = vmatpush1.bf16.msra.mxu0 %v1540
          %1561 = vmatprep.subr.bf16.mxu0 0
          %1562 = vmatpush1.bf16.msra.mxu0 %v1541
          %1563 = vmatprep.subr.bf16.mxu0 0
          %1564 = vmatpush1.bf16.msra.mxu0 %v1542
          %1565 = vmatprep.subr.bf16.mxu0 0
          %1566 = vmatpush1.bf16.msra.mxu0 %v1543
          %1567 = vmatprep.subr.bf16.mxu0 0
          %1568 = vmatpush1.bf16.msra.mxu0 %v1544
          %1569 = vmatprep.subr.bf16.mxu0 0
          %1570 = vmatpush1.bf16.msra.mxu0 0
          %1571 = vmatprep.subr.bf16.mxu0 0
          %1572 = vmatpush1.bf16.msra.mxu0 0
          %1573 = vmatprep.subr.bf16.mxu0 0
          %1574 = vmatpush1.bf16.msra.mxu0 0
          %1575 = vmatprep.subr.bf16.mxu0 0
          %1576 = vmatpush1.bf16.msra.mxu0 0
          %1577 = vmatprep.subr.bf16.mxu0 0
          %1578 = vmatpush1.bf16.msra.mxu0 0
          %1579 = vmatprep.subr.bf16.mxu0 0
          %1580 = vmatpush1.bf16.msra.mxu0 0
          %1581 = vmatprep.subr.bf16.mxu0 0
          %1582 = vmatpush1.bf16.msra.mxu0 0
          %1583 = vmatprep.subr.bf16.mxu0 0
          %1584 = vmatpush1.bf16.msra.mxu0 0
          %1585 = vmatprep.mubr.bf16.mxu0 0
          %1586 = vmatmul.mubr.bf16.gmra.mrb[0].mxu0 %v1469
          %v1587 = vpop.f32.mrb[0].mxu0
          %v1588 = vadd.f32 0.0, %v1587
          %v1589 = vpop.f32.mrb[0].mxu0
          %v1590 = vpop.f32.mrb[0].mxu0
          %v1591 = vadd.f32 0.0, %v1590
          %v1592 = vpop.f32.mrb[0].mxu0
          %1593 = vmatprep.mubr.bf16.mxu0 0
          %1594 = vmatmul.mubr.bf16.gmra.mrb[0].mxu0 %v1470
          %v1595 = vpop.f32.mrb[0].mxu0
          %v1596 = vadd.f32 0.0, %v1595
          %v1597 = vpop.f32.mrb[0].mxu0
          %v1598 = vpop.f32.mrb[0].mxu0
          %v1599 = vadd.f32 0.0, %v1598
          %v1600 = vpop.f32.mrb[0].mxu0
          %1601 = vmatprep.mubr.bf16.mxu0 0
          %1602 = vmatmul.mubr.bf16.gmra.mrb[0].mxu0 %v1471
          %v1603 = vpop.f32.mrb[0].mxu0
          %v1604 = vadd.f32 0.0, %v1603
          %v1605 = vpop.f32.mrb[0].mxu0
          %v1606 = vpop.f32.mrb[0].mxu0
          %v1607 = vadd.f32 0.0, %v1606
          %v1608 = vpop.f32.mrb[0].mxu0
          %1609 = vmatprep.mubr.bf16.mxu0 0
          %1610 = vmatmul.mubr.bf16.gmra.mrb[0].mxu0 %v1472
          %v1611 = vpop.f32.mrb[0].mxu0
          %v1612 = vadd.f32 0.0, %v1611
          %v1613 = vpop.f32.mrb[0].mxu0
          %v1614 = vpop.f32.mrb[0].mxu0
          %v1615 = vadd.f32 0.0, %v1614
          %v1616 = vpop.f32.mrb[0].mxu0
          %1617 = vmatprep.mubr.bf16.mxu0 0
          %1618 = vmatmul.mubr.bf16.gmra.mrb[0].mxu0 %v1473
          %v1619 = vpop.f32.mrb[0].mxu0
          %v1620 = vadd.f32 0.0, %v1619
          %v1621 = vpop.f32.mrb[0].mxu0
          %v1622 = vpop.f32.mrb[0].mxu0
          %v1623 = vadd.f32 0.0, %v1622
          %v1624 = vpop.f32.mrb[0].mxu0
          %1625 = vmatprep.mubr.bf16.mxu0 0
          %1626 = vmatmul.mubr.bf16.gmra.mrb[0].mxu0 %v1474
          %v1627 = vpop.f32.mrb[0].mxu0
          %v1628 = vadd.f32 0.0, %v1627
          %v1629 = vpop.f32.mrb[0].mxu0
          %v1630 = vpop.f32.mrb[0].mxu0
          %v1631 = vadd.f32 0.0, %v1630
          %v1632 = vpop.f32.mrb[0].mxu0
          %1633 = vmatprep.mubr.bf16.mxu0 0
          %1634 = vmatmul.mubr.bf16.gmra.mrb[0].mxu0 %v1475
          %v1635 = vpop.f32.mrb[0].mxu0
          %v1636 = vadd.f32 0.0, %v1635
          %v1637 = vpop.f32.mrb[0].mxu0
          %v1638 = vpop.f32.mrb[0].mxu0
          %v1639 = vadd.f32 0.0, %v1638
          %v1640 = vpop.f32.mrb[0].mxu0
          %1641 = vmatprep.mubr.bf16.mxu0 0
          %1642 = vmatmul.mubr.bf16.gmra.mrb[0].mxu0 %v1476
          %v1643 = vpop.f32.mrb[0].mxu0
          %v1644 = vadd.f32 0.0, %v1643
          %v1645 = vpop.f32.mrb[0].mxu0
          %v1646 = vpop.f32.mrb[0].mxu0
          %v1647 = vadd.f32 0.0, %v1646
          %v1648 = vpop.f32.mrb[0].mxu0
          %1649 = vdwg.mxu0
          %v1650 = vpack.c.bf16 %v1591, %v1588
          %v1651 = vpack.c.bf16 %v1599, %v1596
          %v1652 = vpack.c.bf16 %v1607, %v1604
          %v1653 = vpack.c.bf16 %v1615, %v1612
          %v1654 = vpack.c.bf16 %v1623, %v1620
          %v1655 = vpack.c.bf16 %v1631, %v1628
          %v1656 = vpack.c.bf16 %v1639, %v1636
          %v1657 = vpack.c.bf16 %v1647, %v1644
          %s1658 = smul.addr %s1477, 8
          %s1659 = scalar_lea.vmem [#allocation3], %s1658
          %1660 = vst [vmem:[%s1659] sm:$0xff] %v1650
          %1661 = vst [vmem:[%s1659 + $0x8] sm:$0xff] %v1651
          %1662 = vst [vmem:[%s1659 + $0x10] sm:$0xff] %v1652
          %1663 = vst [vmem:[%s1659 + $0x18] sm:$0xff] %v1653
          %1664 = vst [vmem:[%s1659 + $0x20] sm:$0xff] %v1654
          %1665 = vst [vmem:[%s1659 + $0x28] sm:$0xff] %v1655
          %1666 = vst [vmem:[%s1659 + $0x30] sm:$0xff] %v1656
          %1667 = vst [vmem:[%s1659 + $0x38] sm:$0xff] %v1657
        $region84: #{tpu_custom_call.1} parent=63 // pred_fallthru
          _
        %p1668 = scmp.eq.s32.totalorder %s32, 1
        // Predicated region
        $region85: #{tpu_custom_call.1} parent=63 // pred_check
          %p1669 = pneg %p1668
        $region86: #{tpu_custom_call.1} parent=63 // pred_check_branch
          %1671 = sbr.rel (%p1669) target = $region88
        $region87: #{tpu_custom_call.1} parent=63 // pred_region
          %s1672 = sshra.s32 %s472, 4
          %s1673 = sand.u32 %s472, 15
          %s1674 = smul.addr %s1672, 8
          %s1675 = scalar_lea.vmem [#allocation2], %s1674
          %v1676 = vld [vmem:[%s1675] sm:$0xff]
          %v1677 = vld [vmem:[%s1675 + $0x8] sm:$0xff]
          %v1678 = vld [vmem:[%s1675 + $0x10] sm:$0xff]
          %v1679 = vld [vmem:[%s1675 + $0x18] sm:$0xff]
          %v1680 = vld [vmem:[%s1675 + $0x20] sm:$0xff]
          %v1681 = vld [vmem:[%s1675 + $0x28] sm:$0xff]
          %v1682 = vld [vmem:[%s1675 + $0x30] sm:$0xff]
          %v1683 = vld [vmem:[%s1675 + $0x38] sm:$0xff]
          %v1684 = vld [vmem:[#allocation3] sm:$0xff]
          %v1685 = vld [vmem:[#allocation3 + $0x8] sm:$0xff]
          %v1686 = vld [vmem:[#allocation3 + $0x10] sm:$0xff]
          %v1687 = vld [vmem:[#allocation3 + $0x18] sm:$0xff]
          %v1688 = vld [vmem:[#allocation3 + $0x20] sm:$0xff]
          %v1689 = vld [vmem:[#allocation3 + $0x28] sm:$0xff]
          %v1690 = vld [vmem:[#allocation3 + $0x30] sm:$0xff]
          %v1691 = vld [vmem:[#allocation3 + $0x38] sm:$0xff]
          %1692 = vmatprep.subr.bf16.mxu0 0
          %1693 = vmatpush1.bf16.msra.mxu0 %v1684
          %1694 = vmatprep.subr.bf16.mxu0 0
          %1695 = vmatpush1.bf16.msra.mxu0 %v1685
          %1696 = vmatprep.subr.bf16.mxu0 0
          %1697 = vmatpush1.bf16.msra.mxu0 %v1686
          %1698 = vmatprep.subr.bf16.mxu0 0
          %1699 = vmatpush1.bf16.msra.mxu0 %v1687
          %1700 = vmatprep.subr.bf16.mxu0 0
          %1701 = vmatpush1.bf16.msra.mxu0 %v1688
          %1702 = vmatprep.subr.bf16.mxu0 0
          %1703 = vmatpush1.bf16.msra.mxu0 %v1689
          %1704 = vmatprep.subr.bf16.mxu0 0
          %1705 = vmatpush1.bf16.msra.mxu0 %v1690
          %1706 = vmatprep.subr.bf16.mxu0 0
          %1707 = vmatpush1.bf16.msra.mxu0 %v1691
          %1708 = vmatprep.subr.bf16.mxu0 0
          %1709 = vmatpush1.bf16.msra.mxu0 0
          %1710 = vmatprep.subr.bf16.mxu0 0
          %1711 = vmatpush1.bf16.msra.mxu0 0
          %1712 = vmatprep.subr.bf16.mxu0 0
          %1713 = vmatpush1.bf16.msra.mxu0 0
          %1714 = vmatprep.subr.bf16.mxu0 0
          %1715 = vmatpush1.bf16.msra.mxu0 0
          %1716 = vmatprep.subr.bf16.mxu0 0
          %1717 = vmatpush1.bf16.msra.mxu0 0
          %1718 = vmatprep.subr.bf16.mxu0 0
          %1719 = vmatpush1.bf16.msra.mxu0 0
          %1720 = vmatprep.subr.bf16.mxu0 0
          %1721 = vmatpush1.bf16.msra.mxu0 0
          %1722 = vmatprep.subr.bf16.mxu0 0
          %1723 = vmatpush1.bf16.msra.mxu0 0
          %1724 = vmatprep.mubr.bf16.mxu0 0
          %1725 = vmatmul.mubr.bf16.gmra.mrb[0].mxu0 %v477
          %v1726 = vpop.f32.mrb[0].mxu0
          %v1727 = vadd.f32 0.0, %v1726
          %v1728 = vpop.f32.mrb[0].mxu0
          %v1729 = vpop.f32.mrb[0].mxu0
          %v1730 = vadd.f32 0.0, %v1729
          %v1731 = vpop.f32.mrb[0].mxu0
          %1732 = vmatprep.mubr.bf16.mxu0 0
          %1733 = vmatmul.mubr.bf16.gmra.mrb[0].mxu0 %v478
          %v1734 = vpop.f32.mrb[0].mxu0
          %v1735 = vadd.f32 0.0, %v1734
          %v1736 = vpop.f32.mrb[0].mxu0
          %v1737 = vpop.f32.mrb[0].mxu0
          %v1738 = vadd.f32 0.0, %v1737
          %v1739 = vpop.f32.mrb[0].mxu0
          %1740 = vmatprep.mubr.bf16.mxu0 0
          %1741 = vmatmul.mubr.bf16.gmra.mrb[0].mxu0 %v479
          %v1742 = vpop.f32.mrb[0].mxu0
          %v1743 = vadd.f32 0.0, %v1742
          %v1744 = vpop.f32.mrb[0].mxu0
          %v1745 = vpop.f32.mrb[0].mxu0
          %v1746 = vadd.f32 0.0, %v1745
          %v1747 = vpop.f32.mrb[0].mxu0
          %1748 = vmatprep.mubr.bf16.mxu0 0
          %1749 = vmatmul.mubr.bf16.gmra.mrb[0].mxu0 %v480
          %v1750 = vpop.f32.mrb[0].mxu0
          %v1751 = vadd.f32 0.0, %v1750
          %v1752 = vpop.f32.mrb[0].mxu0
          %v1753 = vpop.f32.mrb[0].mxu0
          %v1754 = vadd.f32 0.0, %v1753
          %v1755 = vpop.f32.mrb[0].mxu0
          %1756 = vmatprep.mubr.bf16.mxu0 0
          %1757 = vmatmul.mubr.bf16.gmra.mrb[0].mxu0 %v481
          %v1758 = vpop.f32.mrb[0].mxu0
          %v1759 = vadd.f32 0.0, %v1758
          %v1760 = vpop.f32.mrb[0].mxu0
          %v1761 = vpop.f32.mrb[0].mxu0
          %v1762 = vadd.f32 0.0, %v1761
          %v1763 = vpop.f32.mrb[0].mxu0
          %1764 = vmatprep.mubr.bf16.mxu0 0
          %1765 = vmatmul.mubr.bf16.gmra.mrb[0].mxu0 %v482
          %v1766 = vpop.f32.mrb[0].mxu0
          %v1767 = vadd.f32 0.0, %v1766
          %v1768 = vpop.f32.mrb[0].mxu0
          %v1769 = vpop.f32.mrb[0].mxu0
          %v1770 = vadd.f32 0.0, %v1769
          %v1771 = vpop.f32.mrb[0].mxu0
          %1772 = vmatprep.mubr.bf16.mxu0 0
          %1773 = vmatmul.mubr.bf16.gmra.mrb[0].mxu0 %v483
          %v1774 = vpop.f32.mrb[0].mxu0
          %v1775 = vadd.f32 0.0, %v1774
          %v1776 = vpop.f32.mrb[0].mxu0
          %v1777 = vpop.f32.mrb[0].mxu0
          %v1778 = vadd.f32 0.0, %v1777
          %v1779 = vpop.f32.mrb[0].mxu0
          %1780 = vmatprep.mubr.bf16.mxu0 0
          %1781 = vmatmul.mubr.bf16.gmra.mrb[0].mxu0 %v484
          %v1782 = vpop.f32.mrb[0].mxu0
          %v1783 = vadd.f32 0.0, %v1782
          %v1784 = vpop.f32.mrb[0].mxu0
          %v1785 = vpop.f32.mrb[0].mxu0
          %v1786 = vadd.f32 0.0, %v1785
          %v1787 = vpop.f32.mrb[0].mxu0
          %1788 = vdwg.mxu0
          %1790 = vset.pattern.permute.xlu0 0
          %1791 = vperm.xlu0 %1790, %v485
          %v1792 = vpop.permute.xlu0 %1791
          %1795 = vset.pattern.permute.xlu0 0
          %1796 = vperm.xlu0 %1795, %v486
          %v1797 = vpop.permute.xlu0 %1796
          %1800 = vset.pattern.permute.xlu0 0
          %1801 = vperm.xlu0 %1800, %v487
          %v1802 = vpop.permute.xlu0 %1801
          %1805 = vset.pattern.permute.xlu0 0
          %1806 = vperm.xlu0 %1805, %v488
          %v1807 = vpop.permute.xlu0 %1806
          %1810 = vset.pattern.permute.xlu0 0
          %1811 = vperm.xlu0 %1810, %v489
          %v1812 = vpop.permute.xlu0 %1811
          %1815 = vset.pattern.permute.xlu0 0
          %1816 = vperm.xlu0 %1815, %v490
          %v1817 = vpop.permute.xlu0 %1816
          %1820 = vset.pattern.permute.xlu0 0
          %1821 = vperm.xlu0 %1820, %v491
          %v1822 = vpop.permute.xlu0 %1821
          %1825 = vset.pattern.permute.xlu0 0
          %1826 = vperm.xlu0 %1825, %v492
          %v1827 = vpop.permute.xlu0 %1826
          %1830 = vset.pattern.permute.xlu0 0
          %1831 = vperm.xlu0 %1830, %v493
          %v1832 = vpop.permute.xlu0 %1831
          %1835 = vset.pattern.permute.xlu0 0
          %1836 = vperm.xlu0 %1835, %v494
          %v1837 = vpop.permute.xlu0 %1836
          %1840 = vset.pattern.permute.xlu0 0
          %1841 = vperm.xlu0 %1840, %v495
          %v1842 = vpop.permute.xlu0 %1841
          %1845 = vset.pattern.permute.xlu0 0
          %1846 = vperm.xlu0 %1845, %v496
          %v1847 = vpop.permute.xlu0 %1846
          %1850 = vset.pattern.permute.xlu0 0
          %1851 = vperm.xlu0 %1850, %v497
          %v1852 = vpop.permute.xlu0 %1851
          %1855 = vset.pattern.permute.xlu0 0
          %1856 = vperm.xlu0 %1855, %v498
          %v1857 = vpop.permute.xlu0 %1856
          %1860 = vset.pattern.permute.xlu0 0
          %1861 = vperm.xlu0 %1860, %v499
          %v1862 = vpop.permute.xlu0 %1861
          %1865 = vset.pattern.permute.xlu0 0
          %1866 = vperm.xlu0 %1865, %v500
          %v1867 = vpop.permute.xlu0 %1866
          %v1869 = vmul.f32 %v1727, %v1792
          %v1870 = vmul.f32 %v1730, %v1797
          %v1871 = vmul.f32 %v1735, %v1802
          %v1872 = vmul.f32 %v1738, %v1807
          %v1873 = vmul.f32 %v1743, %v1812
          %v1874 = vmul.f32 %v1746, %v1817
          %v1875 = vmul.f32 %v1751, %v1822
          %v1876 = vmul.f32 %v1754, %v1827
          %v1877 = vmul.f32 %v1759, %v1832
          %v1878 = vmul.f32 %v1762, %v1837
          %v1879 = vmul.f32 %v1767, %v1842
          %v1880 = vmul.f32 %v1770, %v1847
          %v1881 = vmul.f32 %v1775, %v1852
          %v1882 = vmul.f32 %v1778, %v1857
          %v1883 = vmul.f32 %v1783, %v1862
          %v1884 = vmul.f32 %v1786, %v1867
          %v1885 = vld [vmem:[#allocation9] sm:$0xf]
          %v1886 = vld [vmem:[#allocation9 + $0x4] sm:$0xf]
          %v1887 = vld [vmem:[#allocation9 + $0x8] sm:$0xf]
          %v1888 = vld [vmem:[#allocation9 + $0xc] sm:$0xf]
          %v1889 = vld [vmem:[#allocation9 + $0x10] sm:$0xf]
          %v1890 = vld [vmem:[#allocation9 + $0x14] sm:$0xf]
          %v1891 = vld [vmem:[#allocation9 + $0x18] sm:$0xf]
          %v1892 = vld [vmem:[#allocation9 + $0x1c] sm:$0xf]
          %v1893 = vld [vmem:[#allocation9 + $0x20] sm:$0xf]
          %v1894 = vld [vmem:[#allocation9 + $0x24] sm:$0xf]
          %v1895 = vld [vmem:[#allocation9 + $0x28] sm:$0xf]
          %v1896 = vld [vmem:[#allocation9 + $0x2c] sm:$0xf]
          %v1897 = vld [vmem:[#allocation9 + $0x30] sm:$0xf]
          %v1898 = vld [vmem:[#allocation9 + $0x34] sm:$0xf]
          %v1899 = vld [vmem:[#allocation9 + $0x38] sm:$0xf]
          %v1900 = vld [vmem:[#allocation9 + $0x3c] sm:$0xf]
          %v1917 = vunpack.c.l.b16 %v1885
          %v1918 = vunpack.c.l.b16 %v1886
          %v1919 = vunpack.c.l.b16 %v1887
          %v1920 = vunpack.c.l.b16 %v1888
          %v1921 = vunpack.c.l.b16 %v1889
          %v1922 = vunpack.c.l.b16 %v1890
          %v1923 = vunpack.c.l.b16 %v1891
          %v1924 = vunpack.c.l.b16 %v1892
          %v1925 = vunpack.c.l.b16 %v1893
          %v1926 = vunpack.c.l.b16 %v1894
          %v1927 = vunpack.c.l.b16 %v1895
          %v1928 = vunpack.c.l.b16 %v1896
          %v1929 = vunpack.c.l.b16 %v1897
          %v1930 = vunpack.c.l.b16 %v1898
          %v1931 = vunpack.c.l.b16 %v1899
          %v1932 = vunpack.c.l.b16 %v1900
          %v1933 = vpack.c.b16 %v1918, %v1917
          %v1934 = vpack.c.b16 %v1920, %v1919
          %v1935 = vpack.c.b16 %v1922, %v1921
          %v1936 = vpack.c.b16 %v1924, %v1923
          %v1937 = vpack.c.b16 %v1926, %v1925
          %v1938 = vpack.c.b16 %v1928, %v1927
          %v1939 = vpack.c.b16 %v1930, %v1929
          %v1940 = vpack.c.b16 %v1932, %v1931
          %1949 = vmatprep.subr.bf16.mxu0 0
          %1950 = vmatpush1.bf16.msra.mxu0 %v1933
          %1951 = vmatprep.subr.bf16.mxu0 0
          %1952 = vmatpush1.bf16.msra.mxu0 %v1934
          %1953 = vmatprep.subr.bf16.mxu0 0
          %1954 = vmatpush1.bf16.msra.mxu0 %v1935
          %1955 = vmatprep.subr.bf16.mxu0 0
          %1956 = vmatpush1.bf16.msra.mxu0 %v1936
          %1957 = vmatprep.subr.bf16.mxu0 0
          %1958 = vmatpush1.bf16.msra.mxu0 %v1937
          %1959 = vmatprep.subr.bf16.mxu0 0
          %1960 = vmatpush1.bf16.msra.mxu0 %v1938
          %1961 = vmatprep.subr.bf16.mxu0 0
          %1962 = vmatpush1.bf16.msra.mxu0 %v1939
          %1963 = vmatprep.subr.bf16.mxu0 0
          %1964 = vmatpush1.bf16.msra.mxu0 %v1940
          %1965 = vmatprep.subr.bf16.mxu0 0
          %1966 = vmatpush1.bf16.msra.mxu0 0
          %1967 = vmatprep.subr.bf16.mxu0 0
          %1968 = vmatpush1.bf16.msra.mxu0 0
          %1969 = vmatprep.subr.bf16.mxu0 0
          %1970 = vmatpush1.bf16.msra.mxu0 0
          %1971 = vmatprep.subr.bf16.mxu0 0
          %1972 = vmatpush1.bf16.msra.mxu0 0
          %1973 = vmatprep.subr.bf16.mxu0 0
          %1974 = vmatpush1.bf16.msra.mxu0 0
          %1975 = vmatprep.subr.bf16.mxu0 0
          %1976 = vmatpush1.bf16.msra.mxu0 0
          %1977 = vmatprep.subr.bf16.mxu0 0
          %1978 = vmatpush1.bf16.msra.mxu0 0
          %1979 = vmatprep.subr.bf16.mxu0 0
          %1980 = vmatpush1.bf16.msra.mxu0 0
          %1981 = vmatprep.mubr.bf16.mxu0 0
          %1982 = vmatmul.mubr.bf16.gmra.mrb[0].mxu0 %v1676
          %v1983 = vpop.f32.mrb[0].mxu0
          %v1984 = vadd.f32 %v1869, %v1983
          %v1985 = vpop.f32.mrb[0].mxu0
          %v1986 = vpop.f32.mrb[0].mxu0
          %v1987 = vadd.f32 %v1870, %v1986
          %v1988 = vpop.f32.mrb[0].mxu0
          %1989 = vmatprep.mubr.bf16.mxu0 0
          %1990 = vmatmul.mubr.bf16.gmra.mrb[0].mxu0 %v1677
          %v1991 = vpop.f32.mrb[0].mxu0
          %v1992 = vadd.f32 %v1871, %v1991
          %v1993 = vpop.f32.mrb[0].mxu0
          %v1994 = vpop.f32.mrb[0].mxu0
          %v1995 = vadd.f32 %v1872, %v1994
          %v1996 = vpop.f32.mrb[0].mxu0
          %1997 = vmatprep.mubr.bf16.mxu0 0
          %1998 = vmatmul.mubr.bf16.gmra.mrb[0].mxu0 %v1678
          %v1999 = vpop.f32.mrb[0].mxu0
          %v2000 = vadd.f32 %v1873, %v1999
          %v2001 = vpop.f32.mrb[0].mxu0
          %v2002 = vpop.f32.mrb[0].mxu0
          %v2003 = vadd.f32 %v1874, %v2002
          %v2004 = vpop.f32.mrb[0].mxu0
          %2005 = vmatprep.mubr.bf16.mxu0 0
          %2006 = vmatmul.mubr.bf16.gmra.mrb[0].mxu0 %v1679
          %v2007 = vpop.f32.mrb[0].mxu0
          %v2008 = vadd.f32 %v1875, %v2007
          %v2009 = vpop.f32.mrb[0].mxu0
          %v2010 = vpop.f32.mrb[0].mxu0
          %v2011 = vadd.f32 %v1876, %v2010
          %v2012 = vpop.f32.mrb[0].mxu0
          %2013 = vmatprep.mubr.bf16.mxu0 0
          %2014 = vmatmul.mubr.bf16.gmra.mrb[0].mxu0 %v1680
          %v2015 = vpop.f32.mrb[0].mxu0
          %v2016 = vadd.f32 %v1877, %v2015
          %v2017 = vpop.f32.mrb[0].mxu0
          %v2018 = vpop.f32.mrb[0].mxu0
          %v2019 = vadd.f32 %v1878, %v2018
          %v2020 = vpop.f32.mrb[0].mxu0
          %2021 = vmatprep.mubr.bf16.mxu0 0
          %2022 = vmatmul.mubr.bf16.gmra.mrb[0].mxu0 %v1681
          %v2023 = vpop.f32.mrb[0].mxu0
          %v2024 = vadd.f32 %v1879, %v2023
          %v2025 = vpop.f32.mrb[0].mxu0
          %v2026 = vpop.f32.mrb[0].mxu0
          %v2027 = vadd.f32 %v1880, %v2026
          %v2028 = vpop.f32.mrb[0].mxu0
          %2029 = vmatprep.mubr.bf16.mxu0 0
          %2030 = vmatmul.mubr.bf16.gmra.mrb[0].mxu0 %v1682
          %v2031 = vpop.f32.mrb[0].mxu0
          %v2032 = vadd.f32 %v1881, %v2031
          %v2033 = vpop.f32.mrb[0].mxu0
          %v2034 = vpop.f32.mrb[0].mxu0
          %v2035 = vadd.f32 %v1882, %v2034
          %v2036 = vpop.f32.mrb[0].mxu0
          %2037 = vmatprep.mubr.bf16.mxu0 0
          %2038 = vmatmul.mubr.bf16.gmra.mrb[0].mxu0 %v1683
          %v2039 = vpop.f32.mrb[0].mxu0
          %v2040 = vadd.f32 %v1883, %v2039
          %v2041 = vpop.f32.mrb[0].mxu0
          %v2042 = vpop.f32.mrb[0].mxu0
          %v2043 = vadd.f32 %v1884, %v2042
          %v2044 = vpop.f32.mrb[0].mxu0
          %2045 = vdwg.mxu0
          %v2046 = vld [vmem:[%s10] sm:$0x1]
          %v2048 = vlaneseq
          %v2049 = vshrl.u32 %v2048, 7
          %v2050 = vsub.s32 0, %v2049
          %v2051 = vrot.slane %v2046, %v2050
          %v2053 = vadd.f32 %v1984, %v2051
          %v2054 = vadd.f32 %v1987, %v2051
          %v2055 = vadd.f32 %v1992, %v2051
          %v2056 = vadd.f32 %v1995, %v2051
          %v2057 = vadd.f32 %v2000, %v2051
          %v2058 = vadd.f32 %v2003, %v2051
          %v2059 = vadd.f32 %v2008, %v2051
          %v2060 = vadd.f32 %v2011, %v2051
          %v2061 = vadd.f32 %v2016, %v2051
          %v2062 = vadd.f32 %v2019, %v2051
          %v2063 = vadd.f32 %v2024, %v2051
          %v2064 = vadd.f32 %v2027, %v2051
          %v2065 = vadd.f32 %v2032, %v2051
          %v2066 = vadd.f32 %v2035, %v2051
          %v2067 = vadd.f32 %v2040, %v2051
          %v2068 = vadd.f32 %v2043, %v2051
          %2069 = vst [vmem:[%s461] sm:$0xff] %v2053
          %2070 = vst [vmem:[%s461 + $0x8] sm:$0xff] %v2054
          %2071 = vst [vmem:[%s461 + $0x10] sm:$0xff] %v2055
          %2072 = vst [vmem:[%s461 + $0x18] sm:$0xff] %v2056
          %2073 = vst [vmem:[%s461 + $0x20] sm:$0xff] %v2057
          %2074 = vst [vmem:[%s461 + $0x28] sm:$0xff] %v2058
          %2075 = vst [vmem:[%s461 + $0x30] sm:$0xff] %v2059
          %2076 = vst [vmem:[%s461 + $0x38] sm:$0xff] %v2060
          %2077 = vst [vmem:[%s461 + $0x40] sm:$0xff] %v2061
          %2078 = vst [vmem:[%s461 + $0x48] sm:$0xff] %v2062
          %2079 = vst [vmem:[%s461 + $0x50] sm:$0xff] %v2063
          %2080 = vst [vmem:[%s461 + $0x58] sm:$0xff] %v2064
          %2081 = vst [vmem:[%s461 + $0x60] sm:$0xff] %v2065
          %2082 = vst [vmem:[%s461 + $0x68] sm:$0xff] %v2066
          %2083 = vst [vmem:[%s461 + $0x70] sm:$0xff] %v2067
          %2084 = vst [vmem:[%s461 + $0x78] sm:$0xff] %v2068
        $region88: #{tpu_custom_call.1} parent=63 // pred_fallthru
          _
        %s2085 = sand.u32 %s291, 1
        %s2086 = scalar_lea.sflag [#allocation6], %s2085
        %s2087 = sand.u32 %s291, 1
        %s2088 = smul.addr %s2087, 128
        %s2089 = scalar_lea.vmem [#allocation12], %s2088
        // Predicated region
        $region89: #{tpu_custom_call.1} parent=63 // pred_check
          %p2090 = pneg %p301
        $region90: #{tpu_custom_call.1} parent=63 // pred_check_branch
          %2092 = sbr.rel (%p2090) target = $region92
        $region91: #{tpu_custom_call.1} parent=63 // pred_region
          %s2093 = smul.u32 %s32, %s33
          %s2094 = smul.u32 16, %s2093
          %s2096 = ssub.s32 2048, 2048
          %2097 = vsyncadd %s2086, %s2096
          %s2098 = smul.addr %s2094, 128
          %s2099 = scalar_lea.hbm %s11, %s2098
          %s2100 = sshll.u32 %s2089, 4
          %s2101 = int_to_ptr.vmem [resolvable:$true] %s2100
          %2106 = dma.vmem_to_hbm [thread:$0]  %s2101, 2048, %s2099, %s2086, 128, 128, 8
        $region92: #{tpu_custom_call.1} parent=63 // pred_fallthru
          _
      $region64: #{tpu_custom_call.1} parent=5 // pred_fallthru
        _
      %p2107 = scmp.le.s32.totalorder 2, %s23
      // Predicated region
      $region93: #{tpu_custom_call.1} parent=5 // pred_check
        %p2108 = pneg %p2107
      $region94: #{tpu_custom_call.1} parent=5 // pred_check_branch
        %2110 = sbr.rel (%p2108) target = $region96
      $region95: #{tpu_custom_call.1} parent=5 // pred_region
        %s2111 = ssub.s32 %s23, 2
        // Predicated region
        $region97: #{tpu_custom_call.1} parent=95 // pred_check
          %p2112 = pneg %p307
        $region98: #{tpu_custom_call.1} parent=95 // pred_check_branch
          %2114 = sbr.rel (%p2112) target = $region100
        $region99: #{tpu_custom_call.1} parent=95 // pred_region
          %s2115 = sand.u32 %s292, 1
          %s2116 = scalar_lea.sflag [#allocation6], %s2115
          %s2117 = sand.u32 %s292, 1
          %s2118 = smul.addr %s2117, 128
          %s2119 = scalar_lea.vmem [#allocation12], %s2118
          %2120 = dma.done %s2116, 2048
        $region100: #{tpu_custom_call.1} parent=95 // pred_fallthru
          _
      $region96: #{tpu_custom_call.1} parent=5 // pred_fallthru
        _
    $region6: #{tpu_custom_call.1} parent=1 // loop_footer
      %s27 = sadd.s32 1, %s23
    $region7: #{tpu_custom_call.1} parent=1 // loop_footer_branch
      %22 = sbr.rel target = $region3
    $region8: #{tpu_custom_call.1} parent=1 // loop_exit
      _
    %2121 = vsyncpa [#allocation5], 1
    %s2122 = scalar_lea.sflag [#allocation5], 1
    %2123 = vsyncpa %s2122, 1
    %2124 = vsyncpa [#allocation8], 1
    %2125 = vsyncpa [#allocation11], 1
    %2126 = vsyncpa [#allocation6], 1
    %s2127 = scalar_lea.sflag [#allocation6], 1
    %2128 = vsyncpa %s2127, 1

</llo_original>
